<compile_context>
chip_gen: v7x
topology: tpu7x:2x2x1
jax: 0.10.0
libtpu: 0.0.40
codegen_flags: <defaults>
</compile_context>

<pallas_src>
import functools

import jax
import jax.numpy as jnp
from jax.experimental import pallas as pl
from jax.experimental.pallas import tpu as pltpu


def _captioning_rnn_kernel(feat_ref, wv_ref, y_ref, mask_ref,
                           w1_ref, b1_ref,
                           wih_ref, whh_ref, bih_ref, bhh_ref,
                           w2_ref, b2_ref,
                           loss_ref, h_scr):
    T, NB, W = wv_ref.shape
    H = whh_ref.shape[0]
    Vp = w2_ref.shape[1]
    TN = T * NB

    # temporal_affine_1: initial hidden state h0 = features @ W1 + b1        (NB, H)
    h = jnp.dot(feat_ref[...], w1_ref[...],
                preferred_element_type=jnp.float32) + b1_ref[...]

    # Hoisted, time-independent input projection for ALL timesteps in one MXU push:
    #   xproj = wv @ W_ih + (b_ih + b_hh)                                    (T*NB, H)
    wv2d = wv_ref[...].reshape(TN, W)          # aligned collapse (NB multiple of 8): free
    b_rnn = bih_ref[...] + bhh_ref[...]
    xproj = jnp.dot(wv2d, wih_ref[...],
                    preferred_element_type=jnp.float32) + b_rnn

    # Time recurrence — T is small & static, so a fully unrolled loop gives the LLO scheduler
    # visibility. Only the (NB,H)@(H,H) dependence chain lives here; h_t is staged to scratch.
    for t in range(T):
        h = jnp.tanh(xproj[t * NB:(t + 1) * NB, :]
                     + jnp.dot(h, whh_ref[...], preferred_element_type=jnp.float32))
        h_scr[pl.ds(t * NB, NB), :] = h

    # Deferred temporal_affine_2 + masked log-softmax loss: one (T*NB,H)@(H,Vp) matmul and one
    # vectorized loss pass instead of T tiny ones. logp is never materialized (lse - z_correct).
    h_all = h_scr[...]                                                       # (T*NB, H)
    logits = (jnp.dot(h_all, w2_ref[...], preferred_element_type=jnp.float32)
              + b2_ref[...]).reshape(T, NB, Vp)                              # lane-dense Vp
    m = jnp.max(logits, axis=-1, keepdims=True)
    z = logits - m
    lse = jnp.log(jnp.sum(jnp.exp(z), axis=-1, keepdims=True))               # (T, NB, 1)
    onehot = jax.lax.broadcasted_iota(jnp.int32, (T, NB, Vp), 2) == y_ref[...]
    correct_z = jnp.sum(jnp.where(onehot, z, 0.0), axis=-1, keepdims=True)   # (T, NB, 1)
    per_elem = mask_ref[...] * (lse - correct_z)                             # (T, NB, 1)
    # Single reduction over time at the very end -> per-batch-row loss.
    loss_ref[...] = jnp.sum(per_elem, axis=0)                                # (NB, 1)


@functools.partial(jax.jit, static_argnames=("null_idx", "nb"))
def captioning_rnn_loss(features, captions, params, null_idx, nb=None):
    """features: (N, D) f32, captions: (N, T_total) int32 -> scalar loss (f32)."""
    captions_in = captions[:, :-1]
    captions_out = captions[:, 1:]
    N, T = captions_in.shape
    D = features.shape[1]
    W_dim, H = params["W_ih"].shape
    V = params["W2"].shape[1]

    # Batch block: multiple of 8 sublanes, capped so VMEM stays comfortable and the MXU M-dim
    # is reasonably filled for larger batches. Demo (N=4) -> nb=8, one grid step.
    if nb is None:
        nb = min(64, ((N + 7) // 8) * 8)

    # Pad batch to a multiple of nb and vocab to full lanes (multiple of 128).
    N_pad = ((N + nb - 1) // nb) * nb
    V_pad = ((V + 127) // 128) * 128
    pad_n = N_pad - N
    pad_v = V_pad - V

    features_p = jnp.pad(features.astype(jnp.float32), ((0, pad_n), (0, 0)))
    captions_in_p = jnp.pad(captions_in, ((0, pad_n), (0, 0)), constant_values=null_idx)
    captions_out_p = jnp.pad(captions_out, ((0, pad_n), (0, 0)), constant_values=null_idx)
    mask = (captions_out_p != null_idx).astype(jnp.float32)                  # (N_pad, T)

    # Embedding lookup stays in JAX glue. Transpose only the tiny int index matrix so the
    # gather directly produces the time-major (T, N_pad, W) layout (no big HBM transpose pass).
    wv = jnp.take(params["W_embed"].astype(jnp.float32),
                  captions_in_p.T, axis=0)                                   # (T, N_pad, W)
    y_t = captions_out_p.T[:, :, None].astype(jnp.int32)                     # (T, N_pad, 1)
    mask_t = mask.T[:, :, None]                                              # (T, N_pad, 1)

    # Lane-pad the vocab: zero W2 columns + -1e30 bias keep the softmax exactly unchanged.
    w2_p = jnp.pad(params["W2"].astype(jnp.float32), ((0, 0), (0, pad_v)))
    b2_p = jnp.pad(params["b2"].astype(jnp.float32), ((0, 0), (0, pad_v)),
                   constant_values=-1e30)

    grid = (N_pad // nb,)
    flops = 2 * N_pad * D * H + 2 * T * N_pad * (W_dim * H + H * H + H * V_pad)
    transcendentals = T * N_pad * (H + V_pad)
    bytes_accessed = 4 * (features_p.size + wv.size + y_t.size + mask_t.size
                          + params["W1"].size + params["b1"].size
                          + params["W_ih"].size + params["W_hh"].size
                          + params["b_ih"].size + params["b_hh"].size
                          + w2_p.size + b2_p.size + N_pad)

    # TODO(synk): at v6e/v7x production shapes, feed bf16 wv/W_ih/W_hh/W2 to the MXU (keep f32
    # accumulation and loss math) and re-derive the VMEM budget / vmem_limit_bytes (v7x: 64 MiB).
    per_row = pl.pallas_call(
        _captioning_rnn_kernel,
        out_shape=jax.ShapeDtypeStruct((N_pad, 1), jnp.float32),
        grid_spec=pltpu.PrefetchScalarGridSpec(
            num_scalar_prefetch=0,
            grid=grid,
            in_specs=[
                pl.BlockSpec((nb, D), lambda i: (i, 0)),             # features
                pl.BlockSpec((T, nb, W_dim), lambda i: (0, i, 0)),   # word vectors (time-major)
                pl.BlockSpec((T, nb, 1), lambda i: (0, i, 0)),       # target ids
                pl.BlockSpec((T, nb, 1), lambda i: (0, i, 0)),       # loss mask
                pl.BlockSpec((D, H), lambda i: (0, 0)),              # W1
                pl.BlockSpec((1, H), lambda i: (0, 0)),              # b1
                pl.BlockSpec((W_dim, H), lambda i: (0, 0)),          # W_ih
                pl.BlockSpec((H, H), lambda i: (0, 0)),              # W_hh
                pl.BlockSpec((1, H), lambda i: (0, 0)),              # b_ih
                pl.BlockSpec((1, H), lambda i: (0, 0)),              # b_hh
                pl.BlockSpec((H, V_pad), lambda i: (0, 0)),          # W2 (lane-padded)
                pl.BlockSpec((1, V_pad), lambda i: (0, 0)),          # b2 (lane-padded)
            ],
            out_specs=pl.BlockSpec((nb, 1), lambda i: (i, 0)),
            scratch_shapes=[pltpu.VMEM((T * nb, H), jnp.float32)],
        ),
        compiler_params=pltpu.CompilerParams(
            dimension_semantics=("parallel",)),
        cost_estimate=pl.CostEstimate(flops=flops,
                                      transcendentals=transcendentals,
                                      bytes_accessed=bytes_accessed),
    )(
        features_p, wv, y_t, mask_t,
        params["W1"].astype(jnp.float32), params["b1"].astype(jnp.float32),
        params["W_ih"].astype(jnp.float32), params["W_hh"].astype(jnp.float32),
        params["b_ih"].astype(jnp.float32), params["b_hh"].astype(jnp.float32),
        w2_p, b2_p,
    )
    # Padded batch rows have mask == 0 -> zero contribution; normalize by the true N.
    return jnp.sum(per_row) / jnp.float32(N)


def _reference_loss(features, captions, params, null_idx):
    """Pure-JAX reference matching the PyTorch forward semantics."""
    captions_in = captions[:, :-1]
    captions_out = captions[:, 1:]
    mask = captions_out != null_idx
    N = features.shape[0]
    h = features @ params["W1"] + params["b1"][0]
    wv = params["W_embed"][captions_in]                                      # (N, T, W)
    T = wv.shape[1]
    loss = jnp.float32(0.0)
    for t in range(T):
        h = jnp.tanh(wv[:, t] @ params["W_ih"] + params["b_ih"][0]
                     + h @ params["W_hh"] + params["b_hh"][0])
        logits = h @ params["W2"] + params["b2"][0]
        logp = jax.nn.log_softmax(logits, axis=-1)
        correct = logp[jnp.arange(N), captions_out[:, t]]
        loss = loss - jnp.sum(jnp.where(mask[:, t], correct, 0.0))
    return loss / N


if __name__ == "__main__":
    # Small shapes consistent with the module's forward.
    N, D, W_DIM, H, V = 4, 32, 32, 32, 16
    T_TOTAL = 8                    # captions length -> T = 7 RNN steps
    NULL, START, END = 0, 1, 2

    key = jax.random.PRNGKey(0)
    ks = jax.random.split(key, 9)

    params = {
        # temporal_affine_1: input_dim -> hidden_dim
        "W1": (jax.random.normal(ks[0], (D, H), jnp.float32) * 0.1),
        "b1": jnp.zeros((1, H), jnp.float32),
        # embedding: vocab -> wordvec
        "W_embed": (jax.random.normal(ks[1], (V, W_DIM), jnp.float32) * 0.1),
        # nn.RNN(wordvec_dim, hidden_dim, num_layers=1), weights pre-transposed
        "W_ih": (jax.random.normal(ks[2], (W_DIM, H), jnp.float32) * 0.1),
        "W_hh": (jax.random.normal(ks[3], (H, H), jnp.float32) * 0.1),
        "b_ih": (jax.random.normal(ks[4], (1, H), jnp.float32) * 0.01),
        "b_hh": (jax.random.normal(ks[5], (1, H), jnp.float32) * 0.01),
        # temporal_affine_2: hidden_dim -> vocab_size
        "W2": (jax.random.normal(ks[6], (H, V), jnp.float32) * 0.1),
        "b2": jnp.zeros((1, V), jnp.float32),
    }

    features = jax.random.normal(ks[7], (N, D), jnp.float32)
    # Deterministic captions: <START>, random words in [3, V), trailing <NULL> padding.
    body = jax.random.randint(ks[8], (N, T_TOTAL - 1), 3, V, dtype=jnp.int32)
    captions = jnp.concatenate(
        [jnp.full((N, 1), START, jnp.int32), body], axis=1)
    captions = captions.at[:, -2:].set(NULL)          # pad tail so the mask matters
    captions = captions.at[:, -3].set(END)

    loss = captioning_rnn_loss(features, captions, params, NULL)
    loss = jax.block_until_ready(loss)

    ref = _reference_loss(features, captions, params, NULL)
    assert jnp.allclose(loss, ref, rtol=1e-4, atol=1e-4), (loss, ref)

    print("KERNEL_OK")
</pallas_src>

<mosaic_0001>
module attributes {stable_mosaic.version = 11 : i64} {
  func.func @_captioning_rnn_kernel(%arg0: i32, %arg1: memref<8x32xf32, #tpu.memory_space<vmem>>, %arg2: memref<7x8x32xf32, #tpu.memory_space<vmem>>, %arg3: memref<7x8x1xi32, #tpu.memory_space<vmem>>, %arg4: memref<7x8x1xf32, #tpu.memory_space<vmem>>, %arg5: memref<32x32xf32, #tpu.memory_space<vmem>>, %arg6: memref<1x32xf32, #tpu.memory_space<vmem>>, %arg7: memref<32x32xf32, #tpu.memory_space<vmem>>, %arg8: memref<32x32xf32, #tpu.memory_space<vmem>>, %arg9: memref<1x32xf32, #tpu.memory_space<vmem>>, %arg10: memref<1x32xf32, #tpu.memory_space<vmem>>, %arg11: memref<32x128xf32, #tpu.memory_space<vmem>>, %arg12: memref<1x128xf32, #tpu.memory_space<vmem>>, %arg13: memref<8x1xf32, #tpu.memory_space<vmem>>, %arg14: memref<56x32xf32, #tpu.memory_space<vmem>>) attributes {dimension_semantics = [#tpu.dimension_semantics<parallel>], iteration_bounds = array<i64: 1>, scalar_prefetch = 0 : i64, scratch_operands = 1 : i64, tpu.core_type = #tpu.core_type<tc>, window_params = [{transform_indices = @transform_0, window_bounds = array<i64: 8, 32>}, {transform_indices = @transform_1, window_bounds = array<i64: 7, 8, 32>}, {transform_indices = @transform_2, window_bounds = array<i64: 7, 8, 1>}, {transform_indices = @transform_3, window_bounds = array<i64: 7, 8, 1>}, {pipeline_mode = #tpu.pipeline_mode<synchronous>, transform_indices = @transform_4, window_bounds = array<i64: 32, 32>}, {pipeline_mode = #tpu.pipeline_mode<synchronous>, transform_indices = @transform_5, window_bounds = array<i64: 1, 32>}, {pipeline_mode = #tpu.pipeline_mode<synchronous>, transform_indices = @transform_6, window_bounds = array<i64: 32, 32>}, {pipeline_mode = #tpu.pipeline_mode<synchronous>, transform_indices = @transform_7, window_bounds = array<i64: 32, 32>}, {pipeline_mode = #tpu.pipeline_mode<synchronous>, transform_indices = @transform_8, window_bounds = array<i64: 1, 32>}, {pipeline_mode = #tpu.pipeline_mode<synchronous>, transform_indices = @transform_9, window_bounds = array<i64: 1, 32>}, {pipeline_mode = #tpu.pipeline_mode<synchronous>, transform_indices = @transform_10, window_bounds = array<i64: 32, 128>}, {pipeline_mode = #tpu.pipeline_mode<synchronous>, transform_indices = @transform_11, window_bounds = array<i64: 1, 128>}, {transform_indices = @transform_12, window_bounds = array<i64: 8, 1>}]} {
    %c0 = arith.constant 0 : index
    %c0_0 = arith.constant 0 : index
    %0 = vector.load %arg1[%c0, %c0_0] : memref<8x32xf32, #tpu.memory_space<vmem>>, vector<8x32xf32>
    %c0_1 = arith.constant 0 : index
    %c0_2 = arith.constant 0 : index
    %1 = vector.load %arg5[%c0_1, %c0_2] : memref<32x32xf32, #tpu.memory_space<vmem>>, vector<32x32xf32>
    %cst = arith.constant dense<0.000000e+00> : vector<8x32xf32>
    %2 = tpu.matmul %0, %1, %cst {dimension_numbers = #tpu.dot_dimension_numbers<[1], [0], [0], [1], [0, 0, 1, 1], [], []>} : vector<8x32xf32>, vector<32x32xf32>, vector<8x32xf32> -> vector<8x32xf32>
    %c0_3 = arith.constant 0 : index
    %c0_4 = arith.constant 0 : index
    %3 = vector.load %arg6[%c0_3, %c0_4] : memref<1x32xf32, #tpu.memory_space<vmem>>, vector<1x32xf32>
    %4 = vector.broadcast %3 : vector<1x32xf32> to vector<8x32xf32>
    %5 = arith.addf %2, %4 : vector<8x32xf32>
    %c0_5 = arith.constant 0 : index
    %c0_6 = arith.constant 0 : index
    %c0_7 = arith.constant 0 : index
    %6 = vector.load %arg2[%c0_5, %c0_6, %c0_7] : memref<7x8x32xf32, #tpu.memory_space<vmem>>, vector<7x8x32xf32>
    %7 = vector.shape_cast %6 : vector<7x8x32xf32> to vector<56x32xf32>
    %c0_8 = arith.constant 0 : index
    %c0_9 = arith.constant 0 : index
    %8 = vector.load %arg9[%c0_8, %c0_9] : memref<1x32xf32, #tpu.memory_space<vmem>>, vector<1x32xf32>
    %c0_10 = arith.constant 0 : index
    %c0_11 = arith.constant 0 : index
    %9 = vector.load %arg10[%c0_10, %c0_11] : memref<1x32xf32, #tpu.memory_space<vmem>>, vector<1x32xf32>
    %10 = arith.addf %8, %9 : vector<1x32xf32>
    %c0_12 = arith.constant 0 : index
    %c0_13 = arith.constant 0 : index
    %11 = vector.load %arg7[%c0_12, %c0_13] : memref<32x32xf32, #tpu.memory_space<vmem>>, vector<32x32xf32>
    %cst_14 = arith.constant dense<0.000000e+00> : vector<56x32xf32>
    %12 = tpu.matmul %7, %11, %cst_14 {dimension_numbers = #tpu.dot_dimension_numbers<[1], [0], [0], [1], [0, 0, 1, 1], [], []>} : vector<56x32xf32>, vector<32x32xf32>, vector<56x32xf32> -> vector<56x32xf32>
    %13 = vector.broadcast %10 : vector<1x32xf32> to vector<56x32xf32>
    %14 = arith.addf %12, %13 : vector<56x32xf32>
    %15 = vector.extract_strided_slice %14 {offsets = [0, 0], sizes = [8, 32], strides = [1, 1]} : vector<56x32xf32> to vector<8x32xf32>
    %c0_15 = arith.constant 0 : index
    %c0_16 = arith.constant 0 : index
    %16 = vector.load %arg8[%c0_15, %c0_16] : memref<32x32xf32, #tpu.memory_space<vmem>>, vector<32x32xf32>
    %cst_17 = arith.constant dense<0.000000e+00> : vector<8x32xf32>
    %17 = tpu.matmul %5, %16, %cst_17 {dimension_numbers = #tpu.dot_dimension_numbers<[1], [0], [0], [1], [0, 0, 1, 1], [], []>} : vector<8x32xf32>, vector<32x32xf32>, vector<8x32xf32> -> vector<8x32xf32>
    %18 = arith.addf %15, %17 : vector<8x32xf32>
    %19 = math.tanh %18 : vector<8x32xf32>
    %c0_18 = arith.constant 0 : index
    %c0_19 = arith.constant 0 : index
    %20 = vector.load %arg14[%c0_18, %c0_19] : memref<56x32xf32, #tpu.memory_space<vmem>>, vector<8x32xf32>
    tpu.vector_store %arg14[%c0_18, %c0_19], %19 {strides = array<i32>} : memref<56x32xf32, #tpu.memory_space<vmem>>, vector<8x32xf32>,
    %21 = vector.extract_strided_slice %14 {offsets = [8, 0], sizes = [8, 32], strides = [1, 1]} : vector<56x32xf32> to vector<8x32xf32>
    %c0_20 = arith.constant 0 : index
    %c0_21 = arith.constant 0 : index
    %22 = vector.load %arg8[%c0_20, %c0_21] : memref<32x32xf32, #tpu.memory_space<vmem>>, vector<32x32xf32>
    %cst_22 = arith.constant dense<0.000000e+00> : vector<8x32xf32>
    %23 = tpu.matmul %19, %22, %cst_22 {dimension_numbers = #tpu.dot_dimension_numbers<[1], [0], [0], [1], [0, 0, 1, 1], [], []>} : vector<8x32xf32>, vector<32x32xf32>, vector<8x32xf32> -> vector<8x32xf32>
    %24 = arith.addf %21, %23 : vector<8x32xf32>
    %25 = math.tanh %24 : vector<8x32xf32>
    %c8 = arith.constant 8 : index
    %c0_23 = arith.constant 0 : index
    %26 = vector.load %arg14[%c8, %c0_23] : memref<56x32xf32, #tpu.memory_space<vmem>>, vector<8x32xf32>
    tpu.vector_store %arg14[%c8, %c0_23], %25 {strides = array<i32>} : memref<56x32xf32, #tpu.memory_space<vmem>>, vector<8x32xf32>,
    %27 = vector.extract_strided_slice %14 {offsets = [16, 0], sizes = [8, 32], strides = [1, 1]} : vector<56x32xf32> to vector<8x32xf32>
    %c0_24 = arith.constant 0 : index
    %c0_25 = arith.constant 0 : index
    %28 = vector.load %arg8[%c0_24, %c0_25] : memref<32x32xf32, #tpu.memory_space<vmem>>, vector<32x32xf32>
    %cst_26 = arith.constant dense<0.000000e+00> : vector<8x32xf32>
    %29 = tpu.matmul %25, %28, %cst_26 {dimension_numbers = #tpu.dot_dimension_numbers<[1], [0], [0], [1], [0, 0, 1, 1], [], []>} : vector<8x32xf32>, vector<32x32xf32>, vector<8x32xf32> -> vector<8x32xf32>
    %30 = arith.addf %27, %29 : vector<8x32xf32>
    %31 = math.tanh %30 : vector<8x32xf32>
    %c16 = arith.constant 16 : index
    %c0_27 = arith.constant 0 : index
    %32 = vector.load %arg14[%c16, %c0_27] : memref<56x32xf32, #tpu.memory_space<vmem>>, vector<8x32xf32>
    tpu.vector_store %arg14[%c16, %c0_27], %31 {strides = array<i32>} : memref<56x32xf32, #tpu.memory_space<vmem>>, vector<8x32xf32>,
    %33 = vector.extract_strided_slice %14 {offsets = [24, 0], sizes = [8, 32], strides = [1, 1]} : vector<56x32xf32> to vector<8x32xf32>
    %c0_28 = arith.constant 0 : index
    %c0_29 = arith.constant 0 : index
    %34 = vector.load %arg8[%c0_28, %c0_29] : memref<32x32xf32, #tpu.memory_space<vmem>>, vector<32x32xf32>
    %cst_30 = arith.constant dense<0.000000e+00> : vector<8x32xf32>
    %35 = tpu.matmul %31, %34, %cst_30 {dimension_numbers = #tpu.dot_dimension_numbers<[1], [0], [0], [1], [0, 0, 1, 1], [], []>} : vector<8x32xf32>, vector<32x32xf32>, vector<8x32xf32> -> vector<8x32xf32>
    %36 = arith.addf %33, %35 : vector<8x32xf32>
    %37 = math.tanh %36 : vector<8x32xf32>
    %c24 = arith.constant 24 : index
    %c0_31 = arith.constant 0 : index
    %38 = vector.load %arg14[%c24, %c0_31] : memref<56x32xf32, #tpu.memory_space<vmem>>, vector<8x32xf32>
    tpu.vector_store %arg14[%c24, %c0_31], %37 {strides = array<i32>} : memref<56x32xf32, #tpu.memory_space<vmem>>, vector<8x32xf32>,
    %39 = vector.extract_strided_slice %14 {offsets = [32, 0], sizes = [8, 32], strides = [1, 1]} : vector<56x32xf32> to vector<8x32xf32>
    %c0_32 = arith.constant 0 : index
    %c0_33 = arith.constant 0 : index
    %40 = vector.load %arg8[%c0_32, %c0_33] : memref<32x32xf32, #tpu.memory_space<vmem>>, vector<32x32xf32>
    %cst_34 = arith.constant dense<0.000000e+00> : vector<8x32xf32>
    %41 = tpu.matmul %37, %40, %cst_34 {dimension_numbers = #tpu.dot_dimension_numbers<[1], [0], [0], [1], [0, 0, 1, 1], [], []>} : vector<8x32xf32>, vector<32x32xf32>, vector<8x32xf32> -> vector<8x32xf32>
    %42 = arith.addf %39, %41 : vector<8x32xf32>
    %43 = math.tanh %42 : vector<8x32xf32>
    %c32 = arith.constant 32 : index
    %c0_35 = arith.constant 0 : index
    %44 = vector.load %arg14[%c32, %c0_35] : memref<56x32xf32, #tpu.memory_space<vmem>>, vector<8x32xf32>
    tpu.vector_store %arg14[%c32, %c0_35], %43 {strides = array<i32>} : memref<56x32xf32, #tpu.memory_space<vmem>>, vector<8x32xf32>,
    %45 = vector.extract_strided_slice %14 {offsets = [40, 0], sizes = [8, 32], strides = [1, 1]} : vector<56x32xf32> to vector<8x32xf32>
    %c0_36 = arith.constant 0 : index
    %c0_37 = arith.constant 0 : index
    %46 = vector.load %arg8[%c0_36, %c0_37] : memref<32x32xf32, #tpu.memory_space<vmem>>, vector<32x32xf32>
    %cst_38 = arith.constant dense<0.000000e+00> : vector<8x32xf32>
    %47 = tpu.matmul %43, %46, %cst_38 {dimension_numbers = #tpu.dot_dimension_numbers<[1], [0], [0], [1], [0, 0, 1, 1], [], []>} : vector<8x32xf32>, vector<32x32xf32>, vector<8x32xf32> -> vector<8x32xf32>
    %48 = arith.addf %45, %47 : vector<8x32xf32>
    %49 = math.tanh %48 : vector<8x32xf32>
    %c40 = arith.constant 40 : index
    %c0_39 = arith.constant 0 : index
    %50 = vector.load %arg14[%c40, %c0_39] : memref<56x32xf32, #tpu.memory_space<vmem>>, vector<8x32xf32>
    tpu.vector_store %arg14[%c40, %c0_39], %49 {strides = array<i32>} : memref<56x32xf32, #tpu.memory_space<vmem>>, vector<8x32xf32>,
    %51 = vector.extract_strided_slice %14 {offsets = [48, 0], sizes = [8, 32], strides = [1, 1]} : vector<56x32xf32> to vector<8x32xf32>
    %c0_40 = arith.constant 0 : index
    %c0_41 = arith.constant 0 : index
    %52 = vector.load %arg8[%c0_40, %c0_41] : memref<32x32xf32, #tpu.memory_space<vmem>>, vector<32x32xf32>
    %cst_42 = arith.constant dense<0.000000e+00> : vector<8x32xf32>
    %53 = tpu.matmul %49, %52, %cst_42 {dimension_numbers = #tpu.dot_dimension_numbers<[1], [0], [0], [1], [0, 0, 1, 1], [], []>} : vector<8x32xf32>, vector<32x32xf32>, vector<8x32xf32> -> vector<8x32xf32>
    %54 = arith.addf %51, %53 : vector<8x32xf32>
    %55 = math.tanh %54 : vector<8x32xf32>
    %c48 = arith.constant 48 : index
    %c0_43 = arith.constant 0 : index
    %56 = vector.load %arg14[%c48, %c0_43] : memref<56x32xf32, #tpu.memory_space<vmem>>, vector<8x32xf32>
    tpu.vector_store %arg14[%c48, %c0_43], %55 {strides = array<i32>} : memref<56x32xf32, #tpu.memory_space<vmem>>, vector<8x32xf32>,
    %c0_44 = arith.constant 0 : index
    %c0_45 = arith.constant 0 : index
    %57 = vector.load %arg14[%c0_44, %c0_45] : memref<56x32xf32, #tpu.memory_space<vmem>>, vector<56x32xf32>
    %c0_46 = arith.constant 0 : index
    %c0_47 = arith.constant 0 : index
    %58 = vector.load %arg11[%c0_46, %c0_47] : memref<32x128xf32, #tpu.memory_space<vmem>>, vector<32x128xf32>
    %cst_48 = arith.constant dense<0.000000e+00> : vector<56x128xf32>
    %59 = tpu.matmul %57, %58, %cst_48 {dimension_numbers = #tpu.dot_dimension_numbers<[1], [0], [0], [1], [0, 0, 1, 1], [], []>} : vector<56x32xf32>, vector<32x128xf32>, vector<56x128xf32> -> vector<56x128xf32>
    %c0_49 = arith.constant 0 : index
    %c0_50 = arith.constant 0 : index
    %60 = vector.load %arg12[%c0_49, %c0_50] : memref<1x128xf32, #tpu.memory_space<vmem>>, vector<1x128xf32>
    %61 = vector.broadcast %60 : vector<1x128xf32> to vector<56x128xf32>
    %62 = arith.addf %59, %61 : vector<56x128xf32>
    %63 = vector.shape_cast %62 : vector<56x128xf32> to vector<7x8x128xf32>
    %cst_51 = arith.constant dense<0xFF800000> : vector<7x8xf32>
    %64 = vector.multi_reduction <maximumf>, %63, %cst_51 [2] : vector<7x8x128xf32> to vector<7x8xf32>
    %65 = vector.shape_cast %64 : vector<7x8xf32> to vector<7x8x1xf32>
    %66 = vector.broadcast %65 : vector<7x8x1xf32> to vector<7x8x128xf32>
    %67 = arith.subf %63, %66 : vector<7x8x128xf32>
    %68 = math.exp %67 : vector<7x8x128xf32>
    %cst_52 = arith.constant dense<0.000000e+00> : vector<7x8xf32>
    %69 = vector.multi_reduction <add>, %68, %cst_52 [2] : vector<7x8x128xf32> to vector<7x8xf32>
    %70 = vector.shape_cast %69 : vector<7x8xf32> to vector<7x8x1xf32>
    %71 = math.log %70 : vector<7x8x1xf32>
    %72 = tpu.iota {dimensions = array<i32: 2>} : vector<7x8x128xi32>
    %c0_53 = arith.constant 0 : index
    %c0_54 = arith.constant 0 : index
    %c0_55 = arith.constant 0 : index
    %73 = vector.load %arg3[%c0_53, %c0_54, %c0_55] : memref<7x8x1xi32, #tpu.memory_space<vmem>>, vector<7x8x1xi32>
    %74 = vector.broadcast %73 : vector<7x8x1xi32> to vector<7x8x128xi32>
    %75 = arith.cmpi eq, %72, %74 : vector<7x8x128xi32>
    %cst_56 = arith.constant 0.000000e+00 : f32
    %76 = vector.broadcast %cst_56 : f32 to vector<7x8x128xf32>
    %77 = arith.select %75, %67, %76 : vector<7x8x128xi1>, vector<7x8x128xf32>
    %cst_57 = arith.constant dense<0.000000e+00> : vector<7x8xf32>
    %78 = vector.multi_reduction <add>, %77, %cst_57 [2] : vector<7x8x128xf32> to vector<7x8xf32>
    %79 = vector.shape_cast %78 : vector<7x8xf32> to vector<7x8x1xf32>
    %c0_58 = arith.constant 0 : index
    %c0_59 = arith.constant 0 : index
    %c0_60 = arith.constant 0 : index
    %80 = vector.load %arg4[%c0_58, %c0_59, %c0_60] : memref<7x8x1xf32, #tpu.memory_space<vmem>>, vector<7x8x1xf32>
    %81 = arith.subf %71, %79 : vector<7x8x1xf32>
    %82 = arith.mulf %80, %81 : vector<7x8x1xf32>
    %cst_61 = arith.constant dense<0.000000e+00> : vector<8x1xf32>
    %83 = vector.multi_reduction <add>, %82, %cst_61 [0] : vector<7x8x1xf32> to vector<8x1xf32>
    %c0_62 = arith.constant 0 : index
    %c0_63 = arith.constant 0 : index
    %84 = vector.load %arg13[%c0_62, %c0_63] : memref<8x1xf32, #tpu.memory_space<vmem>>, vector<8x1xf32>
    tpu.vector_store %arg13[%c0_62, %c0_63], %83 {strides = array<i32>} : memref<8x1xf32, #tpu.memory_space<vmem>>, vector<8x1xf32>,
    return
  }
  func.func @transform_0(%arg0: i32) -> (i32, i32) {
    %c0_i32 = arith.constant 0 : i32
    %c0_i32_0 = arith.constant 0 : i32
    return %arg0, %c0_i32 : i32, i32
  }
  func.func @transform_1(%arg0: i32) -> (i32, i32, i32) {
    %c0_i32 = arith.constant 0 : i32
    %c0_i32_0 = arith.constant 0 : i32
    %c0_i32_1 = arith.constant 0 : i32
    return %c0_i32, %arg0, %c0_i32_0 : i32, i32, i32
  }
  func.func @transform_2(%arg0: i32) -> (i32, i32, i32) {
    %c0_i32 = arith.constant 0 : i32
    %c0_i32_0 = arith.constant 0 : i32
    %c0_i32_1 = arith.constant 0 : i32
    return %c0_i32, %arg0, %c0_i32_0 : i32, i32, i32
  }
  func.func @transform_3(%arg0: i32) -> (i32, i32, i32) {
    %c0_i32 = arith.constant 0 : i32
    %c0_i32_0 = arith.constant 0 : i32
    %c0_i32_1 = arith.constant 0 : i32
    return %c0_i32, %arg0, %c0_i32_0 : i32, i32, i32
  }
  func.func @transform_4(%arg0: i32) -> (i32, i32) {
    %c0_i32 = arith.constant 0 : i32
    %c0_i32_0 = arith.constant 0 : i32
    %c0_i32_1 = arith.constant 0 : i32
    return %c0_i32, %c0_i32_0 : i32, i32
  }
  func.func @transform_5(%arg0: i32) -> (i32, i32) {
    %c0_i32 = arith.constant 0 : i32
    %c0_i32_0 = arith.constant 0 : i32
    %c0_i32_1 = arith.constant 0 : i32
    return %c0_i32, %c0_i32_0 : i32, i32
  }
  func.func @transform_6(%arg0: i32) -> (i32, i32) {
    %c0_i32 = arith.constant 0 : i32
    %c0_i32_0 = arith.constant 0 : i32
    %c0_i32_1 = arith.constant 0 : i32
    return %c0_i32, %c0_i32_0 : i32, i32
  }
  func.func @transform_7(%arg0: i32) -> (i32, i32) {
    %c0_i32 = arith.constant 0 : i32
    %c0_i32_0 = arith.constant 0 : i32
    %c0_i32_1 = arith.constant 0 : i32
    return %c0_i32, %c0_i32_0 : i32, i32
  }
  func.func @transform_8(%arg0: i32) -> (i32, i32) {
    %c0_i32 = arith.constant 0 : i32
    %c0_i32_0 = arith.constant 0 : i32
    %c0_i32_1 = arith.constant 0 : i32
    return %c0_i32, %c0_i32_0 : i32, i32
  }
  func.func @transform_9(%arg0: i32) -> (i32, i32) {
    %c0_i32 = arith.constant 0 : i32
    %c0_i32_0 = arith.constant 0 : i32
    %c0_i32_1 = arith.constant 0 : i32
    return %c0_i32, %c0_i32_0 : i32, i32
  }
  func.func @transform_10(%arg0: i32) -> (i32, i32) {
    %c0_i32 = arith.constant 0 : i32
    %c0_i32_0 = arith.constant 0 : i32
    %c0_i32_1 = arith.constant 0 : i32
    return %c0_i32, %c0_i32_0 : i32, i32
  }
  func.func @transform_11(%arg0: i32) -> (i32, i32) {
    %c0_i32 = arith.constant 0 : i32
    %c0_i32_0 = arith.constant 0 : i32
    %c0_i32_1 = arith.constant 0 : i32
    return %c0_i32, %c0_i32_0 : i32, i32
  }
  func.func @transform_12(%arg0: i32) -> (i32, i32) {
    %c0_i32 = arith.constant 0 : i32
    %c0_i32_0 = arith.constant 0 : i32
    return %arg0, %c0_i32 : i32, i32
  }
}

</mosaic_0001>

<llo_original>
// kernel: captioning_rnn_loss.1
$region0: #{captioning_rnn_loss.1}
  #allocation0 [shape = 'u32[]', space=smem, size = 0x4, offset = 0x4, fixed_abs, tag = 'smem constant byte address 0x4 - core index']
  #allocation1 [shape = 'u32[144,128]{1,0:T(1,128)}', space=vmem, size = 0x12000, scoped, tag = 'internal scratch']
  #allocation2 [shape = 'f32[56,32]{1,0:T(8,128)}', space=vmem, size = 0x7000, scoped, tag = 'scratch operand']
  %s0 = inlined_call_operand.vmem [shape: f32[8,32], index: 0, kind: input, shape index: {}]
  %s1 = inlined_call_operand.vmem [shape: f32[7,8,32], index: 1, kind: input, shape index: {}]
  %s2 = inlined_call_operand.vmem [shape: s32[7,8,1], index: 2, kind: input, shape index: {}]
  %s3 = inlined_call_operand.vmem [shape: f32[7,8,1], index: 3, kind: input, shape index: {}]
  %s4 = inlined_call_operand.vmem [shape: f32[32,32], index: 4, kind: input, shape index: {}]
  %s5 = inlined_call_operand.vmem [shape: f32[1,32], index: 5, kind: input, shape index: {}]
  %s6 = inlined_call_operand.vmem [shape: f32[32,32], index: 6, kind: input, shape index: {}]
  %s7 = inlined_call_operand.vmem [shape: f32[32,32], index: 7, kind: input, shape index: {}]
  %s8 = inlined_call_operand.vmem [shape: f32[1,32], index: 8, kind: input, shape index: {}]
  %s9 = inlined_call_operand.vmem [shape: f32[1,32], index: 9, kind: input, shape index: {}]
  %s10 = inlined_call_operand.vmem [shape: f32[32,128], index: 10, kind: input, shape index: {}]
  %s11 = inlined_call_operand.vmem [shape: f32[1,128], index: 11, kind: input, shape index: {}]
  %s12 = inlined_call_operand.vmem [shape: f32[8,1], index: 12, kind: output, shape index: {}]
  %s13 = sld [smem:[#allocation0]]
  $region58: #{captioning_rnn_loss.1} parent=0
    _
  %s15 = ssub.s32 1, %s13
  %s16 = scalar_select 0, %s15, %s13
  // Predicated region
  $region2: #{captioning_rnn_loss.1} parent=0 // pred_check
    _
  $region3: #{captioning_rnn_loss.1} parent=0 // pred_check_branch
    %18 = sbr.rel (0) target = $region5
  $region4: #{captioning_rnn_loss.1} parent=0 // pred_region
    _
  $region5: #{captioning_rnn_loss.1} parent=0 // pred_fallthru
    _
  // Predicated region
  $region6: #{captioning_rnn_loss.1} parent=0 // pred_check
    _
  $region7: #{captioning_rnn_loss.1} parent=0 // pred_check_branch
    %20 = sbr.rel (0) target = $region9
  $region8: #{captioning_rnn_loss.1} parent=0 // pred_region
    _
  $region9: #{captioning_rnn_loss.1} parent=0 // pred_fallthru
    _
  // Predicated region
  $region10: #{captioning_rnn_loss.1} parent=0 // pred_check
    _
  $region11: #{captioning_rnn_loss.1} parent=0 // pred_check_branch
    %22 = sbr.rel (0) target = $region13
  $region12: #{captioning_rnn_loss.1} parent=0 // pred_region
    _
  $region13: #{captioning_rnn_loss.1} parent=0 // pred_fallthru
    _
  // Predicated region
  $region14: #{captioning_rnn_loss.1} parent=0 // pred_check
    _
  $region15: #{captioning_rnn_loss.1} parent=0 // pred_check_branch
    %24 = sbr.rel (0) target = $region17
  $region16: #{captioning_rnn_loss.1} parent=0 // pred_region
    _
  $region17: #{captioning_rnn_loss.1} parent=0 // pred_fallthru
    _
  // Predicated region
  $region18: #{captioning_rnn_loss.1} parent=0 // pred_check
    _
  $region19: #{captioning_rnn_loss.1} parent=0 // pred_check_branch
    %26 = sbr.rel (0) target = $region21
  $region20: #{captioning_rnn_loss.1} parent=0 // pred_region
    _
  $region21: #{captioning_rnn_loss.1} parent=0 // pred_fallthru
    _
  // Predicated region
  $region22: #{captioning_rnn_loss.1} parent=0 // pred_check
    _
  $region23: #{captioning_rnn_loss.1} parent=0 // pred_check_branch
    %28 = sbr.rel (0) target = $region25
  $region24: #{captioning_rnn_loss.1} parent=0 // pred_region
    _
  $region25: #{captioning_rnn_loss.1} parent=0 // pred_fallthru
    _
  // Predicated region
  $region26: #{captioning_rnn_loss.1} parent=0 // pred_check
    _
  $region27: #{captioning_rnn_loss.1} parent=0 // pred_check_branch
    %30 = sbr.rel (0) target = $region29
  $region28: #{captioning_rnn_loss.1} parent=0 // pred_region
    _
  $region29: #{captioning_rnn_loss.1} parent=0 // pred_fallthru
    _
  // Predicated region
  $region30: #{captioning_rnn_loss.1} parent=0 // pred_check
    _
  $region31: #{captioning_rnn_loss.1} parent=0 // pred_check_branch
    %32 = sbr.rel (0) target = $region33
  $region32: #{captioning_rnn_loss.1} parent=0 // pred_region
    _
  $region33: #{captioning_rnn_loss.1} parent=0 // pred_fallthru
    _
  // Predicated region
  $region34: #{captioning_rnn_loss.1} parent=0 // pred_check
    _
  $region35: #{captioning_rnn_loss.1} parent=0 // pred_check_branch
    %34 = sbr.rel (0) target = $region37
  $region36: #{captioning_rnn_loss.1} parent=0 // pred_region
    _
  $region37: #{captioning_rnn_loss.1} parent=0 // pred_fallthru
    _
  // Predicated region
  $region38: #{captioning_rnn_loss.1} parent=0 // pred_check
    _
  $region39: #{captioning_rnn_loss.1} parent=0 // pred_check_branch
    %36 = sbr.rel (0) target = $region41
  $region40: #{captioning_rnn_loss.1} parent=0 // pred_region
    _
  $region41: #{captioning_rnn_loss.1} parent=0 // pred_fallthru
    _
  // Predicated region
  $region42: #{captioning_rnn_loss.1} parent=0 // pred_check
    _
  $region43: #{captioning_rnn_loss.1} parent=0 // pred_check_branch
    %38 = sbr.rel (0) target = $region45
  $region44: #{captioning_rnn_loss.1} parent=0 // pred_region
    _
  $region45: #{captioning_rnn_loss.1} parent=0 // pred_fallthru
    _
  // Predicated region
  $region46: #{captioning_rnn_loss.1} parent=0 // pred_check
    _
  $region47: #{captioning_rnn_loss.1} parent=0 // pred_check_branch
    %40 = sbr.rel (0) target = $region49
  $region48: #{captioning_rnn_loss.1} parent=0 // pred_region
    _
  $region49: #{captioning_rnn_loss.1} parent=0 // pred_fallthru
    _
  %v41 = vld [vmem:[%s0] sm:$0xff]
  %v42 = vld [vmem:[%s4] sm:$0xff]
  %v43 = vld [vmem:[%s4 + $0x8] sm:$0xff]
  %v44 = vld [vmem:[%s4 + $0x10] sm:$0xff]
  %v45 = vld [vmem:[%s4 + $0x18] sm:$0xff]
  %v46 = vld [vmem:[%s5] sm:$0x1]
  %v48 = vlaneseq
  %v49 = vshrl.u32 %v48, 7
  %v50 = vsub.s32 0, %v49
  %v51 = vrot.slane %v46, %v50
  %vm53 = vcmask 261120
  %v55 = vsel %vm53, %v41, 0
  %57 = vmatprep.subr.mxu0 0.0
  %58 = vmatpush1.msra.mxu0 %v42
  %59 = vmatprep.subr.mxu0 0.0
  %60 = vmatpush1.msra.mxu0 %v43
  %61 = vmatprep.subr.mxu0 0.0
  %62 = vmatpush1.msra.mxu0 %v44
  %63 = vmatprep.subr.mxu0 0.0
  %64 = vmatpush1.msra.mxu0 %v45
  %65 = vmatprep.subr.mxu0 0.0
  %66 = vmatpush1.msra.mxu0 0.0
  %67 = vmatprep.subr.mxu0 0.0
  %68 = vmatpush1.msra.mxu0 0.0
  %69 = vmatprep.subr.mxu0 0.0
  %70 = vmatpush1.msra.mxu0 0.0
  %71 = vmatprep.subr.mxu0 0.0
  %72 = vmatpush1.msra.mxu0 0.0
  %73 = vmatprep.subr.mxu0 0.0
  %74 = vmatpush1.msra.mxu0 0.0
  %75 = vmatprep.subr.mxu0 0.0
  %76 = vmatpush1.msra.mxu0 0.0
  %77 = vmatprep.subr.mxu0 0.0
  %78 = vmatpush1.msra.mxu0 0.0
  %79 = vmatprep.subr.mxu0 0.0
  %80 = vmatpush1.msra.mxu0 0.0
  %81 = vmatprep.subr.mxu0 0.0
  %82 = vmatpush1.msra.mxu0 0.0
  %83 = vmatprep.subr.mxu0 0.0
  %84 = vmatpush1.msra.mxu0 0.0
  %85 = vmatprep.subr.mxu0 0.0
  %86 = vmatpush1.msra.mxu0 0.0
  %87 = vmatprep.subr.mxu0 0.0
  %88 = vmatpush1.msra.mxu0 0.0
  %89 = vmatprep.subr.mxu0 0.0
  %90 = vmatpush1.msra.mxu0 0.0
  %91 = vmatprep.subr.mxu0 0.0
  %92 = vmatpush1.msra.mxu0 0.0
  %93 = vmatprep.subr.mxu0 0.0
  %94 = vmatpush1.msra.mxu0 0.0
  %95 = vmatprep.subr.mxu0 0.0
  %96 = vmatpush1.msra.mxu0 0.0
  %97 = vmatprep.subr.mxu0 0.0
  %98 = vmatpush1.msra.mxu0 0.0
  %99 = vmatprep.subr.mxu0 0.0
  %100 = vmatpush1.msra.mxu0 0.0
  %101 = vmatprep.subr.mxu0 0.0
  %102 = vmatpush1.msra.mxu0 0.0
  %103 = vmatprep.subr.mxu0 0.0
  %104 = vmatpush1.msra.mxu0 0.0
  %105 = vmatprep.subr.mxu0 0.0
  %106 = vmatpush1.msra.mxu0 0.0
  %107 = vmatprep.subr.mxu0 0.0
  %108 = vmatpush1.msra.mxu0 0.0
  %109 = vmatprep.subr.mxu0 0.0
  %110 = vmatpush1.msra.mxu0 0.0
  %111 = vmatprep.subr.mxu0 0.0
  %112 = vmatpush1.msra.mxu0 0.0
  %113 = vmatprep.subr.mxu0 0.0
  %114 = vmatpush1.msra.mxu0 0.0
  %115 = vmatprep.subr.mxu0 0.0
  %116 = vmatpush1.msra.mxu0 0.0
  %117 = vmatprep.subr.mxu0 0.0
  %118 = vmatpush1.msra.mxu0 0.0
  %119 = vmatprep.subr.mxu0 0.0
  %120 = vmatpush1.msra.mxu0 0.0
  %121 = vmatprep.mubr.f32.mxu0 0.0
  %122 = vmatmul.mubr.f32.gmra.mrb[0].mxu0 %v55
  %v123 = vpop.f32.mrb[0].mxu0
  %v124 = vadd.f32 %v51, %v123
  %v125 = vpop.f32.mrb[0].mxu0
  %126 = vdwg.mxu0
  %v127 = vld [vmem:[%s1] sm:$0xff]
  %v128 = vld [vmem:[%s1 + $0x8] sm:$0xff]
  %v129 = vld [vmem:[%s1 + $0x10] sm:$0xff]
  %v130 = vld [vmem:[%s1 + $0x18] sm:$0xff]
  %v131 = vld [vmem:[%s1 + $0x20] sm:$0xff]
  %v132 = vld [vmem:[%s1 + $0x28] sm:$0xff]
  %v133 = vld [vmem:[%s1 + $0x30] sm:$0xff]
  %v134 = vld [vmem:[%s8] sm:$0x1]
  %v135 = vld [vmem:[%s9] sm:$0x1]
  %v136 = vadd.f32 %v134, %v135
  %v137 = vld [vmem:[%s6] sm:$0xff]
  %v138 = vld [vmem:[%s6 + $0x8] sm:$0xff]
  %v139 = vld [vmem:[%s6 + $0x10] sm:$0xff]
  %v140 = vld [vmem:[%s6 + $0x18] sm:$0xff]
  %v142 = vlaneseq
  %v143 = vshrl.u32 %v142, 7
  %v144 = vsub.s32 0, %v143
  %v145 = vrot.slane %v136, %v144
  %v148 = vsel %vm53, %v127, 0
  %v151 = vsel %vm53, %v128, 0
  %v154 = vsel %vm53, %v129, 0
  %v157 = vsel %vm53, %v130, 0
  %v160 = vsel %vm53, %v131, 0
  %v163 = vsel %vm53, %v132, 0
  %v166 = vsel %vm53, %v133, 0
  %168 = vmatprep.subr.mxu0 0.0
  %169 = vmatpush1.msra.mxu0 %v137
  %170 = vmatprep.subr.mxu0 0.0
  %171 = vmatpush1.msra.mxu0 %v138
  %172 = vmatprep.subr.mxu0 0.0
  %173 = vmatpush1.msra.mxu0 %v139
  %174 = vmatprep.subr.mxu0 0.0
  %175 = vmatpush1.msra.mxu0 %v140
  %176 = vmatprep.subr.mxu0 0.0
  %177 = vmatpush1.msra.mxu0 0.0
  %178 = vmatprep.subr.mxu0 0.0
  %179 = vmatpush1.msra.mxu0 0.0
  %180 = vmatprep.subr.mxu0 0.0
  %181 = vmatpush1.msra.mxu0 0.0
  %182 = vmatprep.subr.mxu0 0.0
  %183 = vmatpush1.msra.mxu0 0.0
  %184 = vmatprep.subr.mxu0 0.0
  %185 = vmatpush1.msra.mxu0 0.0
  %186 = vmatprep.subr.mxu0 0.0
  %187 = vmatpush1.msra.mxu0 0.0
  %188 = vmatprep.subr.mxu0 0.0
  %189 = vmatpush1.msra.mxu0 0.0
  %190 = vmatprep.subr.mxu0 0.0
  %191 = vmatpush1.msra.mxu0 0.0
  %192 = vmatprep.subr.mxu0 0.0
  %193 = vmatpush1.msra.mxu0 0.0
  %194 = vmatprep.subr.mxu0 0.0
  %195 = vmatpush1.msra.mxu0 0.0
  %196 = vmatprep.subr.mxu0 0.0
  %197 = vmatpush1.msra.mxu0 0.0
  %198 = vmatprep.subr.mxu0 0.0
  %199 = vmatpush1.msra.mxu0 0.0
  %200 = vmatprep.subr.mxu0 0.0
  %201 = vmatpush1.msra.mxu0 0.0
  %202 = vmatprep.subr.mxu0 0.0
  %203 = vmatpush1.msra.mxu0 0.0
  %204 = vmatprep.subr.mxu0 0.0
  %205 = vmatpush1.msra.mxu0 0.0
  %206 = vmatprep.subr.mxu0 0.0
  %207 = vmatpush1.msra.mxu0 0.0
  %208 = vmatprep.subr.mxu0 0.0
  %209 = vmatpush1.msra.mxu0 0.0
  %210 = vmatprep.subr.mxu0 0.0
  %211 = vmatpush1.msra.mxu0 0.0
  %212 = vmatprep.subr.mxu0 0.0
  %213 = vmatpush1.msra.mxu0 0.0
  %214 = vmatprep.subr.mxu0 0.0
  %215 = vmatpush1.msra.mxu0 0.0
  %216 = vmatprep.subr.mxu0 0.0
  %217 = vmatpush1.msra.mxu0 0.0
  %218 = vmatprep.subr.mxu0 0.0
  %219 = vmatpush1.msra.mxu0 0.0
  %220 = vmatprep.subr.mxu0 0.0
  %221 = vmatpush1.msra.mxu0 0.0
  %222 = vmatprep.subr.mxu0 0.0
  %223 = vmatpush1.msra.mxu0 0.0
  %224 = vmatprep.subr.mxu0 0.0
  %225 = vmatpush1.msra.mxu0 0.0
  %226 = vmatprep.subr.mxu0 0.0
  %227 = vmatpush1.msra.mxu0 0.0
  %228 = vmatprep.subr.mxu0 0.0
  %229 = vmatpush1.msra.mxu0 0.0
  %230 = vmatprep.subr.mxu0 0.0
  %231 = vmatpush1.msra.mxu0 0.0
  %232 = vmatprep.mubr.f32.mxu0 0.0
  %233 = vmatmul.mubr.f32.gmra.mrb[0].mxu0 %v148
  %v234 = vpop.f32.mrb[0].mxu0
  %v235 = vadd.f32 %v145, %v234
  %v236 = vpop.f32.mrb[0].mxu0
  %237 = vmatprep.mubr.f32.mxu0 0.0
  %238 = vmatmul.mubr.f32.gmra.mrb[0].mxu0 %v151
  %v239 = vpop.f32.mrb[0].mxu0
  %v240 = vadd.f32 %v145, %v239
  %v241 = vpop.f32.mrb[0].mxu0
  %242 = vmatprep.mubr.f32.mxu0 0.0
  %243 = vmatmul.mubr.f32.gmra.mrb[0].mxu0 %v154
  %v244 = vpop.f32.mrb[0].mxu0
  %v245 = vadd.f32 %v145, %v244
  %v246 = vpop.f32.mrb[0].mxu0
  %247 = vmatprep.mubr.f32.mxu0 0.0
  %248 = vmatmul.mubr.f32.gmra.mrb[0].mxu0 %v157
  %v249 = vpop.f32.mrb[0].mxu0
  %v250 = vadd.f32 %v145, %v249
  %v251 = vpop.f32.mrb[0].mxu0
  %252 = vmatprep.mubr.f32.mxu0 0.0
  %253 = vmatmul.mubr.f32.gmra.mrb[0].mxu0 %v160
  %v254 = vpop.f32.mrb[0].mxu0
  %v255 = vadd.f32 %v145, %v254
  %v256 = vpop.f32.mrb[0].mxu0
  %257 = vmatprep.mubr.f32.mxu0 0.0
  %258 = vmatmul.mubr.f32.gmra.mrb[0].mxu0 %v163
  %v259 = vpop.f32.mrb[0].mxu0
  %v260 = vadd.f32 %v145, %v259
  %v261 = vpop.f32.mrb[0].mxu0
  %262 = vmatprep.mubr.f32.mxu0 0.0
  %263 = vmatmul.mubr.f32.gmra.mrb[0].mxu0 %v166
  %v264 = vpop.f32.mrb[0].mxu0
  %v265 = vadd.f32 %v145, %v264
  %v266 = vpop.f32.mrb[0].mxu0
  %267 = vdwg.mxu0
  %v268 = vld [vmem:[%s7] sm:$0xff]
  %v269 = vld [vmem:[%s7 + $0x8] sm:$0xff]
  %v270 = vld [vmem:[%s7 + $0x10] sm:$0xff]
  %v271 = vld [vmem:[%s7 + $0x18] sm:$0xff]
  %v273 = vsel %vm53, %v124, 0
  %275 = vmatprep.subr.mxu0 0.0
  %276 = vmatpush1.msra.mxu0 %v268
  %277 = vmatprep.subr.mxu0 0.0
  %278 = vmatpush1.msra.mxu0 %v269
  %279 = vmatprep.subr.mxu0 0.0
  %280 = vmatpush1.msra.mxu0 %v270
  %281 = vmatprep.subr.mxu0 0.0
  %282 = vmatpush1.msra.mxu0 %v271
  %283 = vmatprep.subr.mxu0 0.0
  %284 = vmatpush1.msra.mxu0 0.0
  %285 = vmatprep.subr.mxu0 0.0
  %286 = vmatpush1.msra.mxu0 0.0
  %287 = vmatprep.subr.mxu0 0.0
  %288 = vmatpush1.msra.mxu0 0.0
  %289 = vmatprep.subr.mxu0 0.0
  %290 = vmatpush1.msra.mxu0 0.0
  %291 = vmatprep.subr.mxu0 0.0
  %292 = vmatpush1.msra.mxu0 0.0
  %293 = vmatprep.subr.mxu0 0.0
  %294 = vmatpush1.msra.mxu0 0.0
  %295 = vmatprep.subr.mxu0 0.0
  %296 = vmatpush1.msra.mxu0 0.0
  %297 = vmatprep.subr.mxu0 0.0
  %298 = vmatpush1.msra.mxu0 0.0
  %299 = vmatprep.subr.mxu0 0.0
  %300 = vmatpush1.msra.mxu0 0.0
  %301 = vmatprep.subr.mxu0 0.0
  %302 = vmatpush1.msra.mxu0 0.0
  %303 = vmatprep.subr.mxu0 0.0
  %304 = vmatpush1.msra.mxu0 0.0
  %305 = vmatprep.subr.mxu0 0.0
  %306 = vmatpush1.msra.mxu0 0.0
  %307 = vmatprep.subr.mxu0 0.0
  %308 = vmatpush1.msra.mxu0 0.0
  %309 = vmatprep.subr.mxu0 0.0
  %310 = vmatpush1.msra.mxu0 0.0
  %311 = vmatprep.subr.mxu0 0.0
  %312 = vmatpush1.msra.mxu0 0.0
  %313 = vmatprep.subr.mxu0 0.0
  %314 = vmatpush1.msra.mxu0 0.0
  %315 = vmatprep.subr.mxu0 0.0
  %316 = vmatpush1.msra.mxu0 0.0
  %317 = vmatprep.subr.mxu0 0.0
  %318 = vmatpush1.msra.mxu0 0.0
  %319 = vmatprep.subr.mxu0 0.0
  %320 = vmatpush1.msra.mxu0 0.0
  %321 = vmatprep.subr.mxu0 0.0
  %322 = vmatpush1.msra.mxu0 0.0
  %323 = vmatprep.subr.mxu0 0.0
  %324 = vmatpush1.msra.mxu0 0.0
  %325 = vmatprep.subr.mxu0 0.0
  %326 = vmatpush1.msra.mxu0 0.0
  %327 = vmatprep.subr.mxu0 0.0
  %328 = vmatpush1.msra.mxu0 0.0
  %329 = vmatprep.subr.mxu0 0.0
  %330 = vmatpush1.msra.mxu0 0.0
  %331 = vmatprep.subr.mxu0 0.0
  %332 = vmatpush1.msra.mxu0 0.0
  %333 = vmatprep.subr.mxu0 0.0
  %334 = vmatpush1.msra.mxu0 0.0
  %335 = vmatprep.subr.mxu0 0.0
  %336 = vmatpush1.msra.mxu0 0.0
  %337 = vmatprep.subr.mxu0 0.0
  %338 = vmatpush1.msra.mxu0 0.0
  %339 = vmatprep.mubr.f32.mxu0 0.0
  %340 = vmatmul.mubr.f32.gmra.mrb[0].mxu0 %v273
  %v341 = vpop.f32.mrb[0].mxu0
  %v342 = vadd.f32 0.0, %v341
  %v343 = vpop.f32.mrb[0].mxu0
  %344 = vdwg.mxu0
  %v345 = vadd.f32 %v235, %v342
  %v346 = vtanh.pop %v345
  %347 = vst.msk [vmem:[#allocation2] sm:$0xff] %vm53, %v346
  %v348 = vld [vmem:[%s7] sm:$0xff]
  %v349 = vld [vmem:[%s7 + $0x8] sm:$0xff]
  %v350 = vld [vmem:[%s7 + $0x10] sm:$0xff]
  %v351 = vld [vmem:[%s7 + $0x18] sm:$0xff]
  %v353 = vsel %vm53, %v346, 0
  %355 = vmatprep.subr.mxu0 0.0
  %356 = vmatpush1.msra.mxu0 %v348
  %357 = vmatprep.subr.mxu0 0.0
  %358 = vmatpush1.msra.mxu0 %v349
  %359 = vmatprep.subr.mxu0 0.0
  %360 = vmatpush1.msra.mxu0 %v350
  %361 = vmatprep.subr.mxu0 0.0
  %362 = vmatpush1.msra.mxu0 %v351
  %363 = vmatprep.subr.mxu0 0.0
  %364 = vmatpush1.msra.mxu0 0.0
  %365 = vmatprep.subr.mxu0 0.0
  %366 = vmatpush1.msra.mxu0 0.0
  %367 = vmatprep.subr.mxu0 0.0
  %368 = vmatpush1.msra.mxu0 0.0
  %369 = vmatprep.subr.mxu0 0.0
  %370 = vmatpush1.msra.mxu0 0.0
  %371 = vmatprep.subr.mxu0 0.0
  %372 = vmatpush1.msra.mxu0 0.0
  %373 = vmatprep.subr.mxu0 0.0
  %374 = vmatpush1.msra.mxu0 0.0
  %375 = vmatprep.subr.mxu0 0.0
  %376 = vmatpush1.msra.mxu0 0.0
  %377 = vmatprep.subr.mxu0 0.0
  %378 = vmatpush1.msra.mxu0 0.0
  %379 = vmatprep.subr.mxu0 0.0
  %380 = vmatpush1.msra.mxu0 0.0
  %381 = vmatprep.subr.mxu0 0.0
  %382 = vmatpush1.msra.mxu0 0.0
  %383 = vmatprep.subr.mxu0 0.0
  %384 = vmatpush1.msra.mxu0 0.0
  %385 = vmatprep.subr.mxu0 0.0
  %386 = vmatpush1.msra.mxu0 0.0
  %387 = vmatprep.subr.mxu0 0.0
  %388 = vmatpush1.msra.mxu0 0.0
  %389 = vmatprep.subr.mxu0 0.0
  %390 = vmatpush1.msra.mxu0 0.0
  %391 = vmatprep.subr.mxu0 0.0
  %392 = vmatpush1.msra.mxu0 0.0
  %393 = vmatprep.subr.mxu0 0.0
  %394 = vmatpush1.msra.mxu0 0.0
  %395 = vmatprep.subr.mxu0 0.0
  %396 = vmatpush1.msra.mxu0 0.0
  %397 = vmatprep.subr.mxu0 0.0
  %398 = vmatpush1.msra.mxu0 0.0
  %399 = vmatprep.subr.mxu0 0.0
  %400 = vmatpush1.msra.mxu0 0.0
  %401 = vmatprep.subr.mxu0 0.0
  %402 = vmatpush1.msra.mxu0 0.0
  %403 = vmatprep.subr.mxu0 0.0
  %404 = vmatpush1.msra.mxu0 0.0
  %405 = vmatprep.subr.mxu0 0.0
  %406 = vmatpush1.msra.mxu0 0.0
  %407 = vmatprep.subr.mxu0 0.0
  %408 = vmatpush1.msra.mxu0 0.0
  %409 = vmatprep.subr.mxu0 0.0
  %410 = vmatpush1.msra.mxu0 0.0
  %411 = vmatprep.subr.mxu0 0.0
  %412 = vmatpush1.msra.mxu0 0.0
  %413 = vmatprep.subr.mxu0 0.0
  %414 = vmatpush1.msra.mxu0 0.0
  %415 = vmatprep.subr.mxu0 0.0
  %416 = vmatpush1.msra.mxu0 0.0
  %417 = vmatprep.subr.mxu0 0.0
  %418 = vmatpush1.msra.mxu0 0.0
  %419 = vmatprep.mubr.f32.mxu0 0.0
  %420 = vmatmul.mubr.f32.gmra.mrb[0].mxu0 %v353
  %v421 = vpop.f32.mrb[0].mxu0
  %v422 = vadd.f32 0.0, %v421
  %v423 = vpop.f32.mrb[0].mxu0
  %424 = vdwg.mxu0
  %v425 = vadd.f32 %v240, %v422
  %v426 = vtanh.pop %v425
  %427 = vst.msk [vmem:[#allocation2 + $0x8] sm:$0xff] %vm53, %v426
  %v428 = vld [vmem:[%s7] sm:$0xff]
  %v429 = vld [vmem:[%s7 + $0x8] sm:$0xff]
  %v430 = vld [vmem:[%s7 + $0x10] sm:$0xff]
  %v431 = vld [vmem:[%s7 + $0x18] sm:$0xff]
  %v433 = vsel %vm53, %v426, 0
  %435 = vmatprep.subr.mxu0 0.0
  %436 = vmatpush1.msra.mxu0 %v428
  %437 = vmatprep.subr.mxu0 0.0
  %438 = vmatpush1.msra.mxu0 %v429
  %439 = vmatprep.subr.mxu0 0.0
  %440 = vmatpush1.msra.mxu0 %v430
  %441 = vmatprep.subr.mxu0 0.0
  %442 = vmatpush1.msra.mxu0 %v431
  %443 = vmatprep.subr.mxu0 0.0
  %444 = vmatpush1.msra.mxu0 0.0
  %445 = vmatprep.subr.mxu0 0.0
  %446 = vmatpush1.msra.mxu0 0.0
  %447 = vmatprep.subr.mxu0 0.0
  %448 = vmatpush1.msra.mxu0 0.0
  %449 = vmatprep.subr.mxu0 0.0
  %450 = vmatpush1.msra.mxu0 0.0
  %451 = vmatprep.subr.mxu0 0.0
  %452 = vmatpush1.msra.mxu0 0.0
  %453 = vmatprep.subr.mxu0 0.0
  %454 = vmatpush1.msra.mxu0 0.0
  %455 = vmatprep.subr.mxu0 0.0
  %456 = vmatpush1.msra.mxu0 0.0
  %457 = vmatprep.subr.mxu0 0.0
  %458 = vmatpush1.msra.mxu0 0.0
  %459 = vmatprep.subr.mxu0 0.0
  %460 = vmatpush1.msra.mxu0 0.0
  %461 = vmatprep.subr.mxu0 0.0
  %462 = vmatpush1.msra.mxu0 0.0
  %463 = vmatprep.subr.mxu0 0.0
  %464 = vmatpush1.msra.mxu0 0.0
  %465 = vmatprep.subr.mxu0 0.0
  %466 = vmatpush1.msra.mxu0 0.0
  %467 = vmatprep.subr.mxu0 0.0
  %468 = vmatpush1.msra.mxu0 0.0
  %469 = vmatprep.subr.mxu0 0.0
  %470 = vmatpush1.msra.mxu0 0.0
  %471 = vmatprep.subr.mxu0 0.0
  %472 = vmatpush1.msra.mxu0 0.0
  %473 = vmatprep.subr.mxu0 0.0
  %474 = vmatpush1.msra.mxu0 0.0
  %475 = vmatprep.subr.mxu0 0.0
  %476 = vmatpush1.msra.mxu0 0.0
  %477 = vmatprep.subr.mxu0 0.0
  %478 = vmatpush1.msra.mxu0 0.0
  %479 = vmatprep.subr.mxu0 0.0
  %480 = vmatpush1.msra.mxu0 0.0
  %481 = vmatprep.subr.mxu0 0.0
  %482 = vmatpush1.msra.mxu0 0.0
  %483 = vmatprep.subr.mxu0 0.0
  %484 = vmatpush1.msra.mxu0 0.0
  %485 = vmatprep.subr.mxu0 0.0
  %486 = vmatpush1.msra.mxu0 0.0
  %487 = vmatprep.subr.mxu0 0.0
  %488 = vmatpush1.msra.mxu0 0.0
  %489 = vmatprep.subr.mxu0 0.0
  %490 = vmatpush1.msra.mxu0 0.0
  %491 = vmatprep.subr.mxu0 0.0
  %492 = vmatpush1.msra.mxu0 0.0
  %493 = vmatprep.subr.mxu0 0.0
  %494 = vmatpush1.msra.mxu0 0.0
  %495 = vmatprep.subr.mxu0 0.0
  %496 = vmatpush1.msra.mxu0 0.0
  %497 = vmatprep.subr.mxu0 0.0
  %498 = vmatpush1.msra.mxu0 0.0
  %499 = vmatprep.mubr.f32.mxu0 0.0
  %500 = vmatmul.mubr.f32.gmra.mrb[0].mxu0 %v433
  %v501 = vpop.f32.mrb[0].mxu0
  %v502 = vadd.f32 0.0, %v501
  %v503 = vpop.f32.mrb[0].mxu0
  %504 = vdwg.mxu0
  %v505 = vadd.f32 %v245, %v502
  %v506 = vtanh.pop %v505
  %507 = vst.msk [vmem:[#allocation2 + $0x10] sm:$0xff] %vm53, %v506
  %v508 = vld [vmem:[%s7] sm:$0xff]
  %v509 = vld [vmem:[%s7 + $0x8] sm:$0xff]
  %v510 = vld [vmem:[%s7 + $0x10] sm:$0xff]
  %v511 = vld [vmem:[%s7 + $0x18] sm:$0xff]
  %v513 = vsel %vm53, %v506, 0
  %515 = vmatprep.subr.mxu0 0.0
  %516 = vmatpush1.msra.mxu0 %v508
  %517 = vmatprep.subr.mxu0 0.0
  %518 = vmatpush1.msra.mxu0 %v509
  %519 = vmatprep.subr.mxu0 0.0
  %520 = vmatpush1.msra.mxu0 %v510
  %521 = vmatprep.subr.mxu0 0.0
  %522 = vmatpush1.msra.mxu0 %v511
  %523 = vmatprep.subr.mxu0 0.0
  %524 = vmatpush1.msra.mxu0 0.0
  %525 = vmatprep.subr.mxu0 0.0
  %526 = vmatpush1.msra.mxu0 0.0
  %527 = vmatprep.subr.mxu0 0.0
  %528 = vmatpush1.msra.mxu0 0.0
  %529 = vmatprep.subr.mxu0 0.0
  %530 = vmatpush1.msra.mxu0 0.0
  %531 = vmatprep.subr.mxu0 0.0
  %532 = vmatpush1.msra.mxu0 0.0
  %533 = vmatprep.subr.mxu0 0.0
  %534 = vmatpush1.msra.mxu0 0.0
  %535 = vmatprep.subr.mxu0 0.0
  %536 = vmatpush1.msra.mxu0 0.0
  %537 = vmatprep.subr.mxu0 0.0
  %538 = vmatpush1.msra.mxu0 0.0
  %539 = vmatprep.subr.mxu0 0.0
  %540 = vmatpush1.msra.mxu0 0.0
  %541 = vmatprep.subr.mxu0 0.0
  %542 = vmatpush1.msra.mxu0 0.0
  %543 = vmatprep.subr.mxu0 0.0
  %544 = vmatpush1.msra.mxu0 0.0
  %545 = vmatprep.subr.mxu0 0.0
  %546 = vmatpush1.msra.mxu0 0.0
  %547 = vmatprep.subr.mxu0 0.0
  %548 = vmatpush1.msra.mxu0 0.0
  %549 = vmatprep.subr.mxu0 0.0
  %550 = vmatpush1.msra.mxu0 0.0
  %551 = vmatprep.subr.mxu0 0.0
  %552 = vmatpush1.msra.mxu0 0.0
  %553 = vmatprep.subr.mxu0 0.0
  %554 = vmatpush1.msra.mxu0 0.0
  %555 = vmatprep.subr.mxu0 0.0
  %556 = vmatpush1.msra.mxu0 0.0
  %557 = vmatprep.subr.mxu0 0.0
  %558 = vmatpush1.msra.mxu0 0.0
  %559 = vmatprep.subr.mxu0 0.0
  %560 = vmatpush1.msra.mxu0 0.0
  %561 = vmatprep.subr.mxu0 0.0
  %562 = vmatpush1.msra.mxu0 0.0
  %563 = vmatprep.subr.mxu0 0.0
  %564 = vmatpush1.msra.mxu0 0.0
  %565 = vmatprep.subr.mxu0 0.0
  %566 = vmatpush1.msra.mxu0 0.0
  %567 = vmatprep.subr.mxu0 0.0
  %568 = vmatpush1.msra.mxu0 0.0
  %569 = vmatprep.subr.mxu0 0.0
  %570 = vmatpush1.msra.mxu0 0.0
  %571 = vmatprep.subr.mxu0 0.0
  %572 = vmatpush1.msra.mxu0 0.0
  %573 = vmatprep.subr.mxu0 0.0
  %574 = vmatpush1.msra.mxu0 0.0
  %575 = vmatprep.subr.mxu0 0.0
  %576 = vmatpush1.msra.mxu0 0.0
  %577 = vmatprep.subr.mxu0 0.0
  %578 = vmatpush1.msra.mxu0 0.0
  %579 = vmatprep.mubr.f32.mxu0 0.0
  %580 = vmatmul.mubr.f32.gmra.mrb[0].mxu0 %v513
  %v581 = vpop.f32.mrb[0].mxu0
  %v582 = vadd.f32 0.0, %v581
  %v583 = vpop.f32.mrb[0].mxu0
  %584 = vdwg.mxu0
  %v585 = vadd.f32 %v250, %v582
  %v586 = vtanh.pop %v585
  %587 = vst.msk [vmem:[#allocation2 + $0x18] sm:$0xff] %vm53, %v586
  %v588 = vld [vmem:[%s7] sm:$0xff]
  %v589 = vld [vmem:[%s7 + $0x8] sm:$0xff]
  %v590 = vld [vmem:[%s7 + $0x10] sm:$0xff]
  %v591 = vld [vmem:[%s7 + $0x18] sm:$0xff]
  %v593 = vsel %vm53, %v586, 0
  %595 = vmatprep.subr.mxu0 0.0
  %596 = vmatpush1.msra.mxu0 %v588
  %597 = vmatprep.subr.mxu0 0.0
  %598 = vmatpush1.msra.mxu0 %v589
  %599 = vmatprep.subr.mxu0 0.0
  %600 = vmatpush1.msra.mxu0 %v590
  %601 = vmatprep.subr.mxu0 0.0
  %602 = vmatpush1.msra.mxu0 %v591
  %603 = vmatprep.subr.mxu0 0.0
  %604 = vmatpush1.msra.mxu0 0.0
  %605 = vmatprep.subr.mxu0 0.0
  %606 = vmatpush1.msra.mxu0 0.0
  %607 = vmatprep.subr.mxu0 0.0
  %608 = vmatpush1.msra.mxu0 0.0
  %609 = vmatprep.subr.mxu0 0.0
  %610 = vmatpush1.msra.mxu0 0.0
  %611 = vmatprep.subr.mxu0 0.0
  %612 = vmatpush1.msra.mxu0 0.0
  %613 = vmatprep.subr.mxu0 0.0
  %614 = vmatpush1.msra.mxu0 0.0
  %615 = vmatprep.subr.mxu0 0.0
  %616 = vmatpush1.msra.mxu0 0.0
  %617 = vmatprep.subr.mxu0 0.0
  %618 = vmatpush1.msra.mxu0 0.0
  %619 = vmatprep.subr.mxu0 0.0
  %620 = vmatpush1.msra.mxu0 0.0
  %621 = vmatprep.subr.mxu0 0.0
  %622 = vmatpush1.msra.mxu0 0.0
  %623 = vmatprep.subr.mxu0 0.0
  %624 = vmatpush1.msra.mxu0 0.0
  %625 = vmatprep.subr.mxu0 0.0
  %626 = vmatpush1.msra.mxu0 0.0
  %627 = vmatprep.subr.mxu0 0.0
  %628 = vmatpush1.msra.mxu0 0.0
  %629 = vmatprep.subr.mxu0 0.0
  %630 = vmatpush1.msra.mxu0 0.0
  %631 = vmatprep.subr.mxu0 0.0
  %632 = vmatpush1.msra.mxu0 0.0
  %633 = vmatprep.subr.mxu0 0.0
  %634 = vmatpush1.msra.mxu0 0.0
  %635 = vmatprep.subr.mxu0 0.0
  %636 = vmatpush1.msra.mxu0 0.0
  %637 = vmatprep.subr.mxu0 0.0
  %638 = vmatpush1.msra.mxu0 0.0
  %639 = vmatprep.subr.mxu0 0.0
  %640 = vmatpush1.msra.mxu0 0.0
  %641 = vmatprep.subr.mxu0 0.0
  %642 = vmatpush1.msra.mxu0 0.0
  %643 = vmatprep.subr.mxu0 0.0
  %644 = vmatpush1.msra.mxu0 0.0
  %645 = vmatprep.subr.mxu0 0.0
  %646 = vmatpush1.msra.mxu0 0.0
  %647 = vmatprep.subr.mxu0 0.0
  %648 = vmatpush1.msra.mxu0 0.0
  %649 = vmatprep.subr.mxu0 0.0
  %650 = vmatpush1.msra.mxu0 0.0
  %651 = vmatprep.subr.mxu0 0.0
  %652 = vmatpush1.msra.mxu0 0.0
  %653 = vmatprep.subr.mxu0 0.0
  %654 = vmatpush1.msra.mxu0 0.0
  %655 = vmatprep.subr.mxu0 0.0
  %656 = vmatpush1.msra.mxu0 0.0
  %657 = vmatprep.subr.mxu0 0.0
  %658 = vmatpush1.msra.mxu0 0.0
  %659 = vmatprep.mubr.f32.mxu0 0.0
  %660 = vmatmul.mubr.f32.gmra.mrb[0].mxu0 %v593
  %v661 = vpop.f32.mrb[0].mxu0
  %v662 = vadd.f32 0.0, %v661
  %v663 = vpop.f32.mrb[0].mxu0
  %664 = vdwg.mxu0
  %v665 = vadd.f32 %v255, %v662
  %v666 = vtanh.pop %v665
  %667 = vst.msk [vmem:[#allocation2 + $0x20] sm:$0xff] %vm53, %v666
  %v668 = vld [vmem:[%s7] sm:$0xff]
  %v669 = vld [vmem:[%s7 + $0x8] sm:$0xff]
  %v670 = vld [vmem:[%s7 + $0x10] sm:$0xff]
  %v671 = vld [vmem:[%s7 + $0x18] sm:$0xff]
  %v673 = vsel %vm53, %v666, 0
  %675 = vmatprep.subr.mxu0 0.0
  %676 = vmatpush1.msra.mxu0 %v668
  %677 = vmatprep.subr.mxu0 0.0
  %678 = vmatpush1.msra.mxu0 %v669
  %679 = vmatprep.subr.mxu0 0.0
  %680 = vmatpush1.msra.mxu0 %v670
  %681 = vmatprep.subr.mxu0 0.0
  %682 = vmatpush1.msra.mxu0 %v671
  %683 = vmatprep.subr.mxu0 0.0
  %684 = vmatpush1.msra.mxu0 0.0
  %685 = vmatprep.subr.mxu0 0.0
  %686 = vmatpush1.msra.mxu0 0.0
  %687 = vmatprep.subr.mxu0 0.0
  %688 = vmatpush1.msra.mxu0 0.0
  %689 = vmatprep.subr.mxu0 0.0
  %690 = vmatpush1.msra.mxu0 0.0
  %691 = vmatprep.subr.mxu0 0.0
  %692 = vmatpush1.msra.mxu0 0.0
  %693 = vmatprep.subr.mxu0 0.0
  %694 = vmatpush1.msra.mxu0 0.0
  %695 = vmatprep.subr.mxu0 0.0
  %696 = vmatpush1.msra.mxu0 0.0
  %697 = vmatprep.subr.mxu0 0.0
  %698 = vmatpush1.msra.mxu0 0.0
  %699 = vmatprep.subr.mxu0 0.0
  %700 = vmatpush1.msra.mxu0 0.0
  %701 = vmatprep.subr.mxu0 0.0
  %702 = vmatpush1.msra.mxu0 0.0
  %703 = vmatprep.subr.mxu0 0.0
  %704 = vmatpush1.msra.mxu0 0.0
  %705 = vmatprep.subr.mxu0 0.0
  %706 = vmatpush1.msra.mxu0 0.0
  %707 = vmatprep.subr.mxu0 0.0
  %708 = vmatpush1.msra.mxu0 0.0
  %709 = vmatprep.subr.mxu0 0.0
  %710 = vmatpush1.msra.mxu0 0.0
  %711 = vmatprep.subr.mxu0 0.0
  %712 = vmatpush1.msra.mxu0 0.0
  %713 = vmatprep.subr.mxu0 0.0
  %714 = vmatpush1.msra.mxu0 0.0
  %715 = vmatprep.subr.mxu0 0.0
  %716 = vmatpush1.msra.mxu0 0.0
  %717 = vmatprep.subr.mxu0 0.0
  %718 = vmatpush1.msra.mxu0 0.0
  %719 = vmatprep.subr.mxu0 0.0
  %720 = vmatpush1.msra.mxu0 0.0
  %721 = vmatprep.subr.mxu0 0.0
  %722 = vmatpush1.msra.mxu0 0.0
  %723 = vmatprep.subr.mxu0 0.0
  %724 = vmatpush1.msra.mxu0 0.0
  %725 = vmatprep.subr.mxu0 0.0
  %726 = vmatpush1.msra.mxu0 0.0
  %727 = vmatprep.subr.mxu0 0.0
  %728 = vmatpush1.msra.mxu0 0.0
  %729 = vmatprep.subr.mxu0 0.0
  %730 = vmatpush1.msra.mxu0 0.0
  %731 = vmatprep.subr.mxu0 0.0
  %732 = vmatpush1.msra.mxu0 0.0
  %733 = vmatprep.subr.mxu0 0.0
  %734 = vmatpush1.msra.mxu0 0.0
  %735 = vmatprep.subr.mxu0 0.0
  %736 = vmatpush1.msra.mxu0 0.0
  %737 = vmatprep.subr.mxu0 0.0
  %738 = vmatpush1.msra.mxu0 0.0
  %739 = vmatprep.mubr.f32.mxu0 0.0
  %740 = vmatmul.mubr.f32.gmra.mrb[0].mxu0 %v673
  %v741 = vpop.f32.mrb[0].mxu0
  %v742 = vadd.f32 0.0, %v741
  %v743 = vpop.f32.mrb[0].mxu0
  %744 = vdwg.mxu0
  %v745 = vadd.f32 %v260, %v742
  %v746 = vtanh.pop %v745
  %747 = vst.msk [vmem:[#allocation2 + $0x28] sm:$0xff] %vm53, %v746
  %v748 = vld [vmem:[%s7] sm:$0xff]
  %v749 = vld [vmem:[%s7 + $0x8] sm:$0xff]
  %v750 = vld [vmem:[%s7 + $0x10] sm:$0xff]
  %v751 = vld [vmem:[%s7 + $0x18] sm:$0xff]
  %v753 = vsel %vm53, %v746, 0
  %755 = vmatprep.subr.mxu0 0.0
  %756 = vmatpush1.msra.mxu0 %v748
  %757 = vmatprep.subr.mxu0 0.0
  %758 = vmatpush1.msra.mxu0 %v749
  %759 = vmatprep.subr.mxu0 0.0
  %760 = vmatpush1.msra.mxu0 %v750
  %761 = vmatprep.subr.mxu0 0.0
  %762 = vmatpush1.msra.mxu0 %v751
  %763 = vmatprep.subr.mxu0 0.0
  %764 = vmatpush1.msra.mxu0 0.0
  %765 = vmatprep.subr.mxu0 0.0
  %766 = vmatpush1.msra.mxu0 0.0
  %767 = vmatprep.subr.mxu0 0.0
  %768 = vmatpush1.msra.mxu0 0.0
  %769 = vmatprep.subr.mxu0 0.0
  %770 = vmatpush1.msra.mxu0 0.0
  %771 = vmatprep.subr.mxu0 0.0
  %772 = vmatpush1.msra.mxu0 0.0
  %773 = vmatprep.subr.mxu0 0.0
  %774 = vmatpush1.msra.mxu0 0.0
  %775 = vmatprep.subr.mxu0 0.0
  %776 = vmatpush1.msra.mxu0 0.0
  %777 = vmatprep.subr.mxu0 0.0
  %778 = vmatpush1.msra.mxu0 0.0
  %779 = vmatprep.subr.mxu0 0.0
  %780 = vmatpush1.msra.mxu0 0.0
  %781 = vmatprep.subr.mxu0 0.0
  %782 = vmatpush1.msra.mxu0 0.0
  %783 = vmatprep.subr.mxu0 0.0
  %784 = vmatpush1.msra.mxu0 0.0
  %785 = vmatprep.subr.mxu0 0.0
  %786 = vmatpush1.msra.mxu0 0.0
  %787 = vmatprep.subr.mxu0 0.0
  %788 = vmatpush1.msra.mxu0 0.0
  %789 = vmatprep.subr.mxu0 0.0
  %790 = vmatpush1.msra.mxu0 0.0
  %791 = vmatprep.subr.mxu0 0.0
  %792 = vmatpush1.msra.mxu0 0.0
  %793 = vmatprep.subr.mxu0 0.0
  %794 = vmatpush1.msra.mxu0 0.0
  %795 = vmatprep.subr.mxu0 0.0
  %796 = vmatpush1.msra.mxu0 0.0
  %797 = vmatprep.subr.mxu0 0.0
  %798 = vmatpush1.msra.mxu0 0.0
  %799 = vmatprep.subr.mxu0 0.0
  %800 = vmatpush1.msra.mxu0 0.0
  %801 = vmatprep.subr.mxu0 0.0
  %802 = vmatpush1.msra.mxu0 0.0
  %803 = vmatprep.subr.mxu0 0.0
  %804 = vmatpush1.msra.mxu0 0.0
  %805 = vmatprep.subr.mxu0 0.0
  %806 = vmatpush1.msra.mxu0 0.0
  %807 = vmatprep.subr.mxu0 0.0
  %808 = vmatpush1.msra.mxu0 0.0
  %809 = vmatprep.subr.mxu0 0.0
  %810 = vmatpush1.msra.mxu0 0.0
  %811 = vmatprep.subr.mxu0 0.0
  %812 = vmatpush1.msra.mxu0 0.0
  %813 = vmatprep.subr.mxu0 0.0
  %814 = vmatpush1.msra.mxu0 0.0
  %815 = vmatprep.subr.mxu0 0.0
  %816 = vmatpush1.msra.mxu0 0.0
  %817 = vmatprep.subr.mxu0 0.0
  %818 = vmatpush1.msra.mxu0 0.0
  %819 = vmatprep.mubr.f32.mxu0 0.0
  %820 = vmatmul.mubr.f32.gmra.mrb[0].mxu0 %v753
  %v821 = vpop.f32.mrb[0].mxu0
  %v822 = vadd.f32 0.0, %v821
  %v823 = vpop.f32.mrb[0].mxu0
  %824 = vdwg.mxu0
  %v825 = vadd.f32 %v265, %v822
  %v826 = vtanh.pop %v825
  %827 = vst.msk [vmem:[#allocation2 + $0x30] sm:$0xff] %vm53, %v826
  %v828 = vld [vmem:[#allocation2] sm:$0xff]
  %v829 = vld [vmem:[#allocation2 + $0x8] sm:$0xff]
  %v830 = vld [vmem:[#allocation2 + $0x10] sm:$0xff]
  %v831 = vld [vmem:[#allocation2 + $0x18] sm:$0xff]
  %v832 = vld [vmem:[#allocation2 + $0x20] sm:$0xff]
  %v833 = vld [vmem:[#allocation2 + $0x28] sm:$0xff]
  %v834 = vld [vmem:[#allocation2 + $0x30] sm:$0xff]
  %v835 = vld [vmem:[%s10] sm:$0xff]
  %v836 = vld [vmem:[%s10 + $0x8] sm:$0xff]
  %v837 = vld [vmem:[%s10 + $0x10] sm:$0xff]
  %v838 = vld [vmem:[%s10 + $0x18] sm:$0xff]
  %v839 = vld [vmem:[%s11] sm:$0x1]
  %v841 = vlaneseq
  %v842 = vshrl.u32 %v841, 7
  %v843 = vsub.s32 0, %v842
  %v844 = vrot.slane %v839, %v843
  %v847 = vsel %vm53, %v828, 0
  %v850 = vsel %vm53, %v829, 0
  %v853 = vsel %vm53, %v830, 0
  %v856 = vsel %vm53, %v831, 0
  %v859 = vsel %vm53, %v832, 0
  %v862 = vsel %vm53, %v833, 0
  %v865 = vsel %vm53, %v834, 0
  %867 = vmatprep.subr.mxu0 0.0
  %868 = vmatpush1.msra.mxu0 %v835
  %869 = vmatprep.subr.mxu0 0.0
  %870 = vmatpush1.msra.mxu0 %v836
  %871 = vmatprep.subr.mxu0 0.0
  %872 = vmatpush1.msra.mxu0 %v837
  %873 = vmatprep.subr.mxu0 0.0
  %874 = vmatpush1.msra.mxu0 %v838
  %875 = vmatprep.subr.mxu0 0.0
  %876 = vmatpush1.msra.mxu0 0.0
  %877 = vmatprep.subr.mxu0 0.0
  %878 = vmatpush1.msra.mxu0 0.0
  %879 = vmatprep.subr.mxu0 0.0
  %880 = vmatpush1.msra.mxu0 0.0
  %881 = vmatprep.subr.mxu0 0.0
  %882 = vmatpush1.msra.mxu0 0.0
  %883 = vmatprep.subr.mxu0 0.0
  %884 = vmatpush1.msra.mxu0 0.0
  %885 = vmatprep.subr.mxu0 0.0
  %886 = vmatpush1.msra.mxu0 0.0
  %887 = vmatprep.subr.mxu0 0.0
  %888 = vmatpush1.msra.mxu0 0.0
  %889 = vmatprep.subr.mxu0 0.0
  %890 = vmatpush1.msra.mxu0 0.0
  %891 = vmatprep.subr.mxu0 0.0
  %892 = vmatpush1.msra.mxu0 0.0
  %893 = vmatprep.subr.mxu0 0.0
  %894 = vmatpush1.msra.mxu0 0.0
  %895 = vmatprep.subr.mxu0 0.0
  %896 = vmatpush1.msra.mxu0 0.0
  %897 = vmatprep.subr.mxu0 0.0
  %898 = vmatpush1.msra.mxu0 0.0
  %899 = vmatprep.subr.mxu0 0.0
  %900 = vmatpush1.msra.mxu0 0.0
  %901 = vmatprep.subr.mxu0 0.0
  %902 = vmatpush1.msra.mxu0 0.0
  %903 = vmatprep.subr.mxu0 0.0
  %904 = vmatpush1.msra.mxu0 0.0
  %905 = vmatprep.subr.mxu0 0.0
  %906 = vmatpush1.msra.mxu0 0.0
  %907 = vmatprep.subr.mxu0 0.0
  %908 = vmatpush1.msra.mxu0 0.0
  %909 = vmatprep.subr.mxu0 0.0
  %910 = vmatpush1.msra.mxu0 0.0
  %911 = vmatprep.subr.mxu0 0.0
  %912 = vmatpush1.msra.mxu0 0.0
  %913 = vmatprep.subr.mxu0 0.0
  %914 = vmatpush1.msra.mxu0 0.0
  %915 = vmatprep.subr.mxu0 0.0
  %916 = vmatpush1.msra.mxu0 0.0
  %917 = vmatprep.subr.mxu0 0.0
  %918 = vmatpush1.msra.mxu0 0.0
  %919 = vmatprep.subr.mxu0 0.0
  %920 = vmatpush1.msra.mxu0 0.0
  %921 = vmatprep.subr.mxu0 0.0
  %922 = vmatpush1.msra.mxu0 0.0
  %923 = vmatprep.subr.mxu0 0.0
  %924 = vmatpush1.msra.mxu0 0.0
  %925 = vmatprep.subr.mxu0 0.0
  %926 = vmatpush1.msra.mxu0 0.0
  %927 = vmatprep.subr.mxu0 0.0
  %928 = vmatpush1.msra.mxu0 0.0
  %929 = vmatprep.subr.mxu0 0.0
  %930 = vmatpush1.msra.mxu0 0.0
  %931 = vmatprep.mubr.f32.mxu0 0.0
  %932 = vmatmul.mubr.f32.gmra.mrb[0].mxu0 %v847
  %v933 = vpop.f32.mrb[0].mxu0
  %v934 = vadd.f32 %v844, %v933
  %v935 = vpop.f32.mrb[0].mxu0
  %936 = vmatprep.mubr.f32.mxu0 0.0
  %937 = vmatmul.mubr.f32.gmra.mrb[0].mxu0 %v850
  %v938 = vpop.f32.mrb[0].mxu0
  %v939 = vadd.f32 %v844, %v938
  %v940 = vpop.f32.mrb[0].mxu0
  %941 = vmatprep.mubr.f32.mxu0 0.0
  %942 = vmatmul.mubr.f32.gmra.mrb[0].mxu0 %v853
  %v943 = vpop.f32.mrb[0].mxu0
  %v944 = vadd.f32 %v844, %v943
  %v945 = vpop.f32.mrb[0].mxu0
  %946 = vmatprep.mubr.f32.mxu0 0.0
  %947 = vmatmul.mubr.f32.gmra.mrb[0].mxu0 %v856
  %v948 = vpop.f32.mrb[0].mxu0
  %v949 = vadd.f32 %v844, %v948
  %v950 = vpop.f32.mrb[0].mxu0
  %951 = vmatprep.mubr.f32.mxu0 0.0
  %952 = vmatmul.mubr.f32.gmra.mrb[0].mxu0 %v859
  %v953 = vpop.f32.mrb[0].mxu0
  %v954 = vadd.f32 %v844, %v953
  %v955 = vpop.f32.mrb[0].mxu0
  %956 = vmatprep.mubr.f32.mxu0 0.0
  %957 = vmatmul.mubr.f32.gmra.mrb[0].mxu0 %v862
  %v958 = vpop.f32.mrb[0].mxu0
  %v959 = vadd.f32 %v844, %v958
  %v960 = vpop.f32.mrb[0].mxu0
  %961 = vmatprep.mubr.f32.mxu0 0.0
  %962 = vmatmul.mubr.f32.gmra.mrb[0].mxu0 %v865
  %v963 = vpop.f32.mrb[0].mxu0
  %v964 = vadd.f32 %v844, %v963
  %v965 = vpop.f32.mrb[0].mxu0
  %966 = vdwg.mxu0
  %967 = vmax.xlane.f32.xlu0 %v934
  %v968 = vpop.xlane.xlu0 %967
  %969 = vmax.xlane.f32.xlu0 %v939
  %v970 = vpop.xlane.xlu0 %969
  %971 = vmax.xlane.f32.xlu0 %v944
  %v972 = vpop.xlane.xlu0 %971
  %973 = vmax.xlane.f32.xlu0 %v949
  %v974 = vpop.xlane.xlu0 %973
  %975 = vmax.xlane.f32.xlu0 %v954
  %v976 = vpop.xlane.xlu0 %975
  %977 = vmax.xlane.f32.xlu0 %v959
  %v978 = vpop.xlane.xlu0 %977
  %979 = vmax.xlane.f32.xlu0 %v964
  %v980 = vpop.xlane.xlu0 %979
  %v981 = vsub.f32 %v934, %v968
  %v982 = vsub.f32 %v939, %v970
  %v983 = vsub.f32 %v944, %v972
  %v984 = vsub.f32 %v949, %v974
  %v985 = vsub.f32 %v954, %v976
  %v986 = vsub.f32 %v959, %v978
  %v987 = vsub.f32 %v964, %v980
  %v988 = vmul.f32 %v981, 1.442695
  %v989 = vpow.pop %v988
  %v990 = vmul.f32 %v982, 1.442695
  %v991 = vpow.pop %v990
  %v992 = vmul.f32 %v983, 1.442695
  %v993 = vpow.pop %v992
  %v994 = vmul.f32 %v984, 1.442695
  %v995 = vpow.pop %v994
  %v996 = vmul.f32 %v985, 1.442695
  %v997 = vpow.pop %v996
  %v998 = vmul.f32 %v986, 1.442695
  %v999 = vpow.pop %v998
  %v1000 = vmul.f32 %v987, 1.442695
  %v1001 = vpow.pop %v1000
  %1002 = vadd.xlane.f32.xlu0 %v989
  %v1003 = vpop.xlane.xlu0 %1002
  %1004 = vadd.xlane.f32.xlu0 %v991
  %v1005 = vpop.xlane.xlu0 %1004
  %1006 = vadd.xlane.f32.xlu0 %v993
  %v1007 = vpop.xlane.xlu0 %1006
  %1008 = vadd.xlane.f32.xlu0 %v995
  %v1009 = vpop.xlane.xlu0 %1008
  %1010 = vadd.xlane.f32.xlu0 %v997
  %v1011 = vpop.xlane.xlu0 %1010
  %1012 = vadd.xlane.f32.xlu0 %v999
  %v1013 = vpop.xlane.xlu0 %1012
  %1014 = vadd.xlane.f32.xlu0 %v1001
  %v1015 = vpop.xlane.xlu0 %1014
  %v1016 = vlog2.pop %v1003
  %v1017 = vmul.f32 %v1016, 0.6931472
  %v1018 = vlog2.pop %v1005
  %v1019 = vmul.f32 %v1018, 0.6931472
  %v1020 = vlog2.pop %v1007
  %v1021 = vmul.f32 %v1020, 0.6931472
  %v1022 = vlog2.pop %v1009
  %v1023 = vmul.f32 %v1022, 0.6931472
  %v1024 = vlog2.pop %v1011
  %v1025 = vmul.f32 %v1024, 0.6931472
  %v1026 = vlog2.pop %v1013
  %v1027 = vmul.f32 %v1026, 0.6931472
  %v1028 = vlog2.pop %v1015
  %v1029 = vmul.f32 %v1028, 0.6931472
  %v1030 = vlaneseq
  %v1031 = vand.u32 %v1030, 127
  %v1032 = vld [vmem:[%s2] sm:$0xff]
  %v1033 = vld [vmem:[%s2 + $0x8] sm:$0xff]
  %v1034 = vld [vmem:[%s2 + $0x10] sm:$0xff]
  %v1035 = vld [vmem:[%s2 + $0x18] sm:$0xff]
  %v1036 = vld [vmem:[%s2 + $0x20] sm:$0xff]
  %v1037 = vld [vmem:[%s2 + $0x28] sm:$0xff]
  %v1038 = vld [vmem:[%s2 + $0x30] sm:$0xff]
  %1039 = vset.pattern.permute.xlu0 0
  %1040 = vperm.xlu0 %1039, %v1032
  %v1041 = vpop.permute.xlu0 %1040
  %1042 = vset.pattern.permute.xlu0 0
  %1043 = vperm.xlu0 %1042, %v1033
  %v1044 = vpop.permute.xlu0 %1043
  %1045 = vset.pattern.permute.xlu0 0
  %1046 = vperm.xlu0 %1045, %v1034
  %v1047 = vpop.permute.xlu0 %1046
  %1048 = vset.pattern.permute.xlu0 0
  %1049 = vperm.xlu0 %1048, %v1035
  %v1050 = vpop.permute.xlu0 %1049
  %1051 = vset.pattern.permute.xlu0 0
  %1052 = vperm.xlu0 %1051, %v1036
  %v1053 = vpop.permute.xlu0 %1052
  %1054 = vset.pattern.permute.xlu0 0
  %1055 = vperm.xlu0 %1054, %v1037
  %v1056 = vpop.permute.xlu0 %1055
  %1057 = vset.pattern.permute.xlu0 0
  %1058 = vperm.xlu0 %1057, %v1038
  %v1059 = vpop.permute.xlu0 %1058
  %vm1060 = vcmp.eq.s32.totalorder %v1031, %v1041
  %vm1061 = vcmp.eq.s32.totalorder %v1031, %v1044
  %vm1062 = vcmp.eq.s32.totalorder %v1031, %v1047
  %vm1063 = vcmp.eq.s32.totalorder %v1031, %v1050
  %vm1064 = vcmp.eq.s32.totalorder %v1031, %v1053
  %vm1065 = vcmp.eq.s32.totalorder %v1031, %v1056
  %vm1066 = vcmp.eq.s32.totalorder %v1031, %v1059
  %v1067 = vsel %vm1060, %v981, 0.0
  %v1068 = vsel %vm1061, %v982, 0.0
  %v1069 = vsel %vm1062, %v983, 0.0
  %v1070 = vsel %vm1063, %v984, 0.0
  %v1071 = vsel %vm1064, %v985, 0.0
  %v1072 = vsel %vm1065, %v986, 0.0
  %v1073 = vsel %vm1066, %v987, 0.0
  %1074 = vadd.xlane.f32.xlu0 %v1067
  %v1075 = vpop.xlane.xlu0 %1074
  %1076 = vadd.xlane.f32.xlu0 %v1068
  %v1077 = vpop.xlane.xlu0 %1076
  %1078 = vadd.xlane.f32.xlu0 %v1069
  %v1079 = vpop.xlane.xlu0 %1078
  %1080 = vadd.xlane.f32.xlu0 %v1070
  %v1081 = vpop.xlane.xlu0 %1080
  %1082 = vadd.xlane.f32.xlu0 %v1071
  %v1083 = vpop.xlane.xlu0 %1082
  %1084 = vadd.xlane.f32.xlu0 %v1072
  %v1085 = vpop.xlane.xlu0 %1084
  %1086 = vadd.xlane.f32.xlu0 %v1073
  %v1087 = vpop.xlane.xlu0 %1086
  %v1088 = vld [vmem:[%s3] sm:$0xff]
  %v1089 = vld [vmem:[%s3 + $0x8] sm:$0xff]
  %v1090 = vld [vmem:[%s3 + $0x10] sm:$0xff]
  %v1091 = vld [vmem:[%s3 + $0x18] sm:$0xff]
  %v1092 = vld [vmem:[%s3 + $0x20] sm:$0xff]
  %v1093 = vld [vmem:[%s3 + $0x28] sm:$0xff]
  %v1094 = vld [vmem:[%s3 + $0x30] sm:$0xff]
  %v1095 = vsub.f32 %v1017, %v1075
  %v1096 = vsub.f32 %v1019, %v1077
  %v1097 = vsub.f32 %v1021, %v1079
  %v1098 = vsub.f32 %v1023, %v1081
  %v1099 = vsub.f32 %v1025, %v1083
  %v1100 = vsub.f32 %v1027, %v1085
  %v1101 = vsub.f32 %v1029, %v1087
  %v1102 = vmul.f32 %v1088, %v1095
  %v1103 = vmul.f32 %v1089, %v1096
  %v1104 = vmul.f32 %v1090, %v1097
  %v1105 = vmul.f32 %v1091, %v1098
  %v1106 = vmul.f32 %v1092, %v1099
  %v1107 = vmul.f32 %v1093, %v1100
  %v1108 = vmul.f32 %v1094, %v1101
  %vm1109 = vcmask 7168
  %v1110 = vsel %vm1109, %v1102, 0.0
  %v1111 = vsel %vm1109, %v1103, 0.0
  %v1112 = vadd.f32 %v1110, %v1111
  %v1113 = vsel %vm1109, %v1104, 0.0
  %v1114 = vadd.f32 %v1112, %v1113
  %v1115 = vsel %vm1109, %v1105, 0.0
  %v1116 = vadd.f32 %v1114, %v1115
  %v1117 = vsel %vm1109, %v1106, 0.0
  %v1118 = vadd.f32 %v1116, %v1117
  %v1119 = vsel %vm1109, %v1107, 0.0
  %v1120 = vadd.f32 %v1118, %v1119
  %v1121 = vsel %vm1109, %v1108, 0.0
  %v1122 = vadd.f32 %v1120, %v1121
  %1123 = vst.msk [vmem:[%s12] sm:$0xff] %vm1109, %v1122
  // Predicated region
  $region50: #{captioning_rnn_loss.1} parent=0 // pred_check
    _
  $region51: #{captioning_rnn_loss.1} parent=0 // pred_check_branch
    %1125 = sbr.rel (0) target = $region53
  $region52: #{captioning_rnn_loss.1} parent=0 // pred_region
    _
  $region53: #{captioning_rnn_loss.1} parent=0 // pred_fallthru
    _
  // Predicated region
  $region54: #{captioning_rnn_loss.1} parent=0 // pred_check
    _
  $region55: #{captioning_rnn_loss.1} parent=0 // pred_check_branch
    %1127 = sbr.rel (0) target = $region57
  $region56: #{captioning_rnn_loss.1} parent=0 // pred_region
    _
  $region57: #{captioning_rnn_loss.1} parent=0 // pred_fallthru
    _

</llo_original>
